<compile_context>
chip_gen: v7x
topology: tpu7x:2x2x1
jax: 0.10.0
libtpu: 0.0.40
codegen_flags: <defaults>
</compile_context>

<pallas_src>
import functools
import math

import jax
import jax.numpy as jnp
import numpy as np
from jax import lax
from jax.experimental import pallas as pl
from jax.experimental.pallas import tpu as pltpu


def _cdiv(a, b):
    return -(-a // b)


def _round_up(x, m):
    return _cdiv(x, m) * m


def _pad_channels(c):
    """Lane-density channel padding: 128 lanes for realistic sizes, 8 for tiny ones."""
    return _round_up(c, 128) if c >= 64 else _round_up(c, 8)


def _pick_row_tile(N, Ho, Wo, Wp, Cin_p, Cout_p, K, stride, align,
                   budget_bytes=12 * 1024 * 1024):
    """Largest output-row tile whose live pipeline blocks fit the VMEM budget."""
    halo = max(K - 1, 1)
    best = align
    th = align
    max_th = _round_up(Ho, align)
    while th <= max_th:
        live = (2 * th * stride * Wp * Cin_p * 2      # double-buffered current rows (bf16)
                + 2 * halo * Wp * Cin_p * 2           # double-buffered halo rows (bf16)
                + 2 * K * K * Cin_p * Cout_p * 2      # weights (bf16)
                + 2 * th * Wo * Cout_p * 4            # double-buffered output (f32)
                + th * Wo * Cout_p * 4)               # fp32 accumulator scratch
        if live > budget_bytes:
            break
        best = th
        th += align
    # keep a few grid steps around so both v7x TensorCores get work and DMA overlaps
    while N * _cdiv(Ho, best) < 4 and best > align:
        best = max(align, ((best // 2) // align) * align)
    return best


def _conv_bn_leaky_kernel(x_ref, halo_ref, w_ref, scale_ref, bias_ref, o_ref, acc_ref,
                          *, K, stride, TH, Wo, Cin_p, leaky_slope, fold_kw):
    """One grid step = one (batch, output-row-block) tile.

    x_ref:     (1, TH*stride, Wp, Cin_p)   bf16 current input rows
    halo_ref:  (1, max(K-1,1), Wp, Cin_p)  bf16 first rows of the next row block
    w_ref:     (K, K*Cin_p, Cout_p) bf16   if fold_kw else (K, K, Cin_p, Cout_p) bf16
    scale_ref: (1, Cout_p) f32             folded BN scale
    bias_ref:  (1, Cout_p) f32             folded BN bias
    o_ref:     (1, TH, Wo, Cout_p) f32
    acc_ref:   (TH, Wo, Cout_p) f32        VMEM accumulator scratch
    """
    x_rows = x_ref[0]
    if K > 1:
        # append the K-1 halo rows; axis 0 is an untiled dim -> cheap VMEM copy
        x_rows = jnp.concatenate([x_rows, halo_ref[0]], axis=0)

    def tap(kh, kw):
        return lax.slice(
            x_rows,
            (kh, kw, 0),
            (kh + (TH - 1) * stride + 1, kw + (Wo - 1) * stride + 1, Cin_p),
            (stride, stride, 1))   # (TH, Wo, Cin_p)

    acc_ref[...] = jnp.zeros_like(acc_ref)
    if fold_kw:
        # Cin_p % 128 == 0: the lane concat is 128-aligned, folding kw into the
        # contraction -> K MXU pushes of depth K*Cin_p instead of K*K of depth Cin_p.
        for kh in range(K):
            taps = [tap(kh, kw) for kw in range(K)]
            slab = taps[0] if K == 1 else jnp.concatenate(taps, axis=-1)
            acc_ref[...] += jnp.einsum("hwc,cd->hwd", slab, w_ref[kh],
                                       preferred_element_type=jnp.float32)
    else:
        # tiny-channel path: contraction is shallow either way, skip the lane concat
        for kh in range(K):
            for kw in range(K):
                acc_ref[...] += jnp.einsum("hwc,cd->hwd", tap(kh, kw), w_ref[kh, kw],
                                           preferred_element_type=jnp.float32)

    # fp32 epilogue: folded eval-mode BatchNorm + LeakyReLU (single VPU max)
    y = acc_ref[...] * scale_ref[0] + bias_ref[0]
    y = jnp.maximum(y, leaky_slope * y)
    o_ref[0] = y.astype(o_ref.dtype)


def conv2d_batch_leaky(x_nchw, weight_oikk, gamma, beta, running_mean, running_var,
                       *, stride=1, leaky_slope=0.1, eps=1e-5, row_tile=None):
    """Forward pass matching Conv2dBatchLeaky (eval-mode BN); NCHW in / NCHW out."""
    N, Cin, H, W = x_nchw.shape
    Cout, Cin_w, K, Kw = weight_oikk.shape
    assert Cin == Cin_w and K == Kw, "square kernel expected"

    pad = int(K / 2)                                  # matches the PyTorch module
    Ho = (H + 2 * pad - K) // stride + 1
    Wo = (W + 2 * pad - K) // stride + 1

    # lane / sublane friendly padded sizes
    Cin_p = _pad_channels(Cin)
    Cout_p = _pad_channels(Cout)
    Wp = _round_up(W + 2 * pad, 8)

    # row tiling; halo-block alignment requires (TH*stride) % halo == 0
    halo = max(K - 1, 1)
    align = halo // math.gcd(halo, stride)
    if row_tile is None:
        row_tile = _pick_row_tile(N, Ho, Wo, Wp, Cin_p, Cout_p, K, stride, align)
    TH = min(_round_up(row_tile, align), _round_up(Ho, align))
    R = _cdiv(Ho, TH)
    Ho_pad = R * TH
    TH_s = TH * stride
    H_tot = R * TH_s + halo          # conv padding + row-tile remainder + halo rows

    # single rearrangement pass: NCHW->NHWC transpose fused with zero padding
    # (conv pad + tiling pad + channel pad), cast to bf16 for the MXU.
    # TODO(synk): in an end-to-end NHWC pipeline this transpose (and the final one) disappears.
    x_nhwc = jnp.transpose(x_nchw, (0, 2, 3, 1)).astype(jnp.bfloat16)
    x_pad = jnp.pad(x_nhwc, ((0, 0),
                             (pad, H_tot - H - pad),
                             (pad, Wp - W - pad),
                             (0, Cin_p - Cin)))

    # weights: (Cout,Cin,Kh,Kw) -> (Kh,Kw,Cin_p,Cout_p), bf16
    w4 = jnp.transpose(weight_oikk, (2, 3, 1, 0))
    w4 = jnp.pad(w4, ((0, 0), (0, 0), (0, Cin_p - Cin), (0, Cout_p - Cout)))
    w4 = w4.astype(jnp.bfloat16)
    fold_kw = (Cin_p % 128 == 0)
    if fold_kw:   # kw-major / cin-minor, matching the in-kernel lane concat order
        w_arg = w4.reshape(K, K * Cin_p, Cout_p)
        w_spec = pl.BlockSpec((K, K * Cin_p, Cout_p), lambda n, r: (0, 0, 0))
    else:
        w_arg = w4
        w_spec = pl.BlockSpec((K, K, Cin_p, Cout_p), lambda n, r: (0, 0, 0, 0))

    # eval-mode BatchNorm folded into per-channel scale/bias (fp32 epilogue)
    scale = (gamma / jnp.sqrt(running_var + eps)).astype(jnp.float32)
    bias = (beta - running_mean * scale).astype(jnp.float32)
    scale = jnp.pad(scale, (0, Cout_p - Cout)).reshape(1, Cout_p)
    bias = jnp.pad(bias, (0, Cout_p - Cout)).reshape(1, Cout_p)

    kernel = functools.partial(
        _conv_bn_leaky_kernel, K=K, stride=stride, TH=TH, Wo=Wo,
        Cin_p=Cin_p, leaky_slope=leaky_slope, fold_kw=fold_kw)

    halo_blk = TH_s // halo          # exact: TH_s % halo == 0 by construction

    out = pl.pallas_call(
        kernel,
        out_shape=jax.ShapeDtypeStruct((N, Ho_pad, Wo, Cout_p), jnp.float32),
        grid_spec=pltpu.PrefetchScalarGridSpec(
            num_scalar_prefetch=0,
            grid=(N, R),
            in_specs=[
                # current TH*stride input rows of batch n (auto double-buffered)
                pl.BlockSpec((1, TH_s, Wp, Cin_p), lambda n, r: (n, r, 0, 0)),
                # K-1 halo rows = first rows of the next row block (pure Blocked indexing)
                pl.BlockSpec((1, halo, Wp, Cin_p),
                             lambda n, r: (n, (r + 1) * halo_blk, 0, 0)),
                w_spec,
                pl.BlockSpec((1, Cout_p), lambda n, r: (0, 0)),
                pl.BlockSpec((1, Cout_p), lambda n, r: (0, 0)),
            ],
            out_specs=pl.BlockSpec((1, TH, Wo, Cout_p), lambda n, r: (n, r, 0, 0)),
            scratch_shapes=[pltpu.VMEM((TH, Wo, Cout_p), jnp.float32)],
        ),
        compiler_params=pltpu.CompilerParams(
            # every (batch, row-block) step is independent -> shard over both v7x TCs
            dimension_semantics=("parallel", "parallel"),
            # explicit scoped-VMEM limit; the tile picker budgets ~12 MiB of live blocks
            # so this fits v5e/v6e and leaves headroom on v7x's 64 MiB physical VMEM.
            vmem_limit_bytes=32 * 1024 * 1024,
        ),
    )(x_pad, x_pad, w_arg, scale, bias)

    # drop row/channel padding, back to the module's NCHW convention
    return jnp.transpose(out[:, :Ho, :, :Cout], (0, 3, 1, 2))


def _reference(x_nchw, weight_oikk, gamma, beta, running_mean, running_var,
               *, stride=1, leaky_slope=0.1, eps=1e-5):
    """Pure-JAX reference (lax conv, fp32/HIGHEST) for correctness checking."""
    K = weight_oikk.shape[-1]
    pad = int(K / 2)
    y = lax.conv_general_dilated(
        x_nchw, weight_oikk,
        window_strides=(stride, stride),
        padding=[(pad, pad), (pad, pad)],
        dimension_numbers=("NCHW", "OIHW", "NCHW"),
        precision=lax.Precision.HIGHEST)
    scale = gamma / jnp.sqrt(running_var + eps)
    bias = beta - running_mean * scale
    y = y * scale[None, :, None, None] + bias[None, :, None, None]
    return jnp.where(y > 0, y, leaky_slope * y)


if __name__ == "__main__":
    # Module hyperparameters (small, deterministic)
    in_channels, out_channels = 4, 8
    kernel_size, stride, leaky_slope = 3, 1, 0.1
    N, H, W = 2, 16, 16

    key = jax.random.PRNGKey(0)
    kx, kw_, kg, kb, km, kv = jax.random.split(key, 6)

    x = jax.random.normal(kx, (N, in_channels, H, W), jnp.float32)
    weight = jax.random.normal(
        kw_, (out_channels, in_channels, kernel_size, kernel_size), jnp.float32) * 0.1
    gamma = 1.0 + 0.1 * jax.random.normal(kg, (out_channels,), jnp.float32)
    beta = 0.1 * jax.random.normal(kb, (out_channels,), jnp.float32)
    running_mean = 0.1 * jax.random.normal(km, (out_channels,), jnp.float32)
    running_var = jnp.abs(1.0 + 0.1 * jax.random.normal(kv, (out_channels,), jnp.float32))

    out = conv2d_batch_leaky(
        x, weight, gamma, beta, running_mean, running_var,
        stride=stride, leaky_slope=leaky_slope,
        row_tile=8)   # force 2 row blocks so the halo / multi-tile path is exercised
    out = jax.block_until_ready(out)

    # The kernel multiplies in bf16 (fp32 accumulation); compare against a reference fed
    # the same bf16-rounded inputs so the check isolates kernel correctness from the
    # intentional bf16 quantization (per the perf review, tolerance relaxed accordingly).
    x_bf = x.astype(jnp.bfloat16).astype(jnp.float32)
    w_bf = weight.astype(jnp.bfloat16).astype(jnp.float32)
    ref = _reference(x_bf, w_bf, gamma, beta, running_mean, running_var,
                     stride=stride, leaky_slope=leaky_slope)
    np.testing.assert_allclose(np.asarray(out), np.asarray(ref), rtol=2e-3, atol=2e-3)

    print("KERNEL_OK")
</pallas_src>

<mosaic_0001>
module attributes {stable_mosaic.version = 11 : i64} {
  func.func @_conv_bn_leaky_kernel(%arg0: i32, %arg1: i32, %arg2: memref<1x8x24x8xbf16, #tpu.memory_space<vmem>>, %arg3: memref<1x2x24x8xbf16, #tpu.memory_space<vmem>>, %arg4: memref<3x3x8x8xbf16, #tpu.memory_space<vmem>>, %arg5: memref<1x8xf32, #tpu.memory_space<vmem>>, %arg6: memref<1x8xf32, #tpu.memory_space<vmem>>, %arg7: memref<1x8x16x8xf32, #tpu.memory_space<vmem>>, %arg8: memref<8x16x8xf32, #tpu.memory_space<vmem>>) attributes {dimension_semantics = [#tpu.dimension_semantics<parallel>, #tpu.dimension_semantics<parallel>], iteration_bounds = array<i64: 2, 2>, scalar_prefetch = 0 : i64, scratch_operands = 1 : i64, tpu.core_type = #tpu.core_type<tc>, window_params = [{transform_indices = @transform_0, window_bounds = array<i64: 1, 8, 24, 8>}, {transform_indices = @transform_1, window_bounds = array<i64: 1, 2, 24, 8>}, {pipeline_mode = #tpu.pipeline_mode<synchronous>, transform_indices = @transform_2, window_bounds = array<i64: 3, 3, 8, 8>}, {pipeline_mode = #tpu.pipeline_mode<synchronous>, transform_indices = @transform_3, window_bounds = array<i64: 1, 8>}, {pipeline_mode = #tpu.pipeline_mode<synchronous>, transform_indices = @transform_4, window_bounds = array<i64: 1, 8>}, {transform_indices = @transform_5, window_bounds = array<i64: 1, 8, 16, 8>}]} {
    %c0 = arith.constant 0 : index
    %c0_0 = arith.constant 0 : index
    %c0_1 = arith.constant 0 : index
    %c0_2 = arith.constant 0 : index
    %0 = vector.load %arg2[%c0, %c0_0, %c0_1, %c0_2] : memref<1x8x24x8xbf16, #tpu.memory_space<vmem>>, vector<1x8x24x8xbf16>
    %1 = vector.shape_cast %0 : vector<1x8x24x8xbf16> to vector<8x24x8xbf16>
    %c0_3 = arith.constant 0 : index
    %c0_4 = arith.constant 0 : index
    %c0_5 = arith.constant 0 : index
    %c0_6 = arith.constant 0 : index
    %2 = vector.load %arg3[%c0_3, %c0_4, %c0_5, %c0_6] : memref<1x2x24x8xbf16, #tpu.memory_space<vmem>>, vector<1x2x24x8xbf16>
    %3 = vector.shape_cast %2 : vector<1x2x24x8xbf16> to vector<2x24x8xbf16>
    %4 = tpu.concatenate %1, %3 in 0 : vector<8x24x8xbf16>, vector<2x24x8xbf16> -> vector<10x24x8xbf16>
    %cst = arith.constant 0.000000e+00 : f32
    %5 = vector.broadcast %cst : f32 to vector<8x16x8xf32>
    %c0_7 = arith.constant 0 : index
    %c0_8 = arith.constant 0 : index
    %c0_9 = arith.constant 0 : index
    %6 = vector.load %arg8[%c0_7, %c0_8, %c0_9] : memref<8x16x8xf32, #tpu.memory_space<vmem>>, vector<8x16x8xf32>
    tpu.vector_store %arg8[%c0_7, %c0_8, %c0_9], %5 {strides = array<i32>} : memref<8x16x8xf32, #tpu.memory_space<vmem>>, vector<8x16x8xf32>,
    %c0_10 = arith.constant 0 : index
    %c0_11 = arith.constant 0 : index
    %c0_12 = arith.constant 0 : index
    %7 = vector.load %arg8[%c0_10, %c0_11, %c0_12] : memref<8x16x8xf32, #tpu.memory_space<vmem>>, vector<8x16x8xf32>
    %8 = vector.extract_strided_slice %4 {offsets = [0, 0, 0], sizes = [8, 16, 8], strides = [1, 1, 1]} : vector<10x24x8xbf16> to vector<8x16x8xbf16>
    %c0_13 = arith.constant 0 : index
    %c0_14 = arith.constant 0 : index
    %c0_15 = arith.constant 0 : index
    %c0_16 = arith.constant 0 : index
    %9 = vector.load %arg4[%c0_13, %c0_14, %c0_15, %c0_16] : memref<3x3x8x8xbf16, #tpu.memory_space<vmem>>, vector<1x1x8x8xbf16>
    %10 = vector.shape_cast %9 : vector<1x1x8x8xbf16> to vector<8x8xbf16>
    "tpu.trace_start"() <{level = 10 : i32, message = "hwc,cd->hwd"}> : () -> ()
    %cst_17 = arith.constant dense<0.000000e+00> : vector<8x16x8xf32>
    %11 = tpu.matmul %8, %10, %cst_17 {dimension_numbers = #tpu.dot_dimension_numbers<[2], [0], [0, 1], [1], [0, 0, 0, 1, 1, 1], [], []>} : vector<8x16x8xbf16>, vector<8x8xbf16>, vector<8x16x8xf32> -> vector<8x16x8xf32>
    "tpu.trace_stop"() : () -> ()
    %12 = arith.addf %7, %11 : vector<8x16x8xf32>
    %c0_18 = arith.constant 0 : index
    %c0_19 = arith.constant 0 : index
    %c0_20 = arith.constant 0 : index
    %13 = vector.load %arg8[%c0_18, %c0_19, %c0_20] : memref<8x16x8xf32, #tpu.memory_space<vmem>>, vector<8x16x8xf32>
    tpu.vector_store %arg8[%c0_18, %c0_19, %c0_20], %12 {strides = array<i32>} : memref<8x16x8xf32, #tpu.memory_space<vmem>>, vector<8x16x8xf32>,
    %c0_21 = arith.constant 0 : index
    %c0_22 = arith.constant 0 : index
    %c0_23 = arith.constant 0 : index
    %14 = vector.load %arg8[%c0_21, %c0_22, %c0_23] : memref<8x16x8xf32, #tpu.memory_space<vmem>>, vector<8x16x8xf32>
    %15 = vector.extract_strided_slice %4 {offsets = [0, 1, 0], sizes = [8, 16, 8], strides = [1, 1, 1]} : vector<10x24x8xbf16> to vector<8x16x8xbf16>
    %c0_24 = arith.constant 0 : index
    %c1 = arith.constant 1 : index
    %c0_25 = arith.constant 0 : index
    %c0_26 = arith.constant 0 : index
    %16 = vector.load %arg4[%c0_24, %c1, %c0_25, %c0_26] : memref<3x3x8x8xbf16, #tpu.memory_space<vmem>>, vector<1x1x8x8xbf16>
    %17 = vector.shape_cast %16 : vector<1x1x8x8xbf16> to vector<8x8xbf16>
    "tpu.trace_start"() <{level = 10 : i32, message = "hwc,cd->hwd"}> : () -> ()
    %cst_27 = arith.constant dense<0.000000e+00> : vector<8x16x8xf32>
    %18 = tpu.matmul %15, %17, %cst_27 {dimension_numbers = #tpu.dot_dimension_numbers<[2], [0], [0, 1], [1], [0, 0, 0, 1, 1, 1], [], []>} : vector<8x16x8xbf16>, vector<8x8xbf16>, vector<8x16x8xf32> -> vector<8x16x8xf32>
    "tpu.trace_stop"() : () -> ()
    %19 = arith.addf %14, %18 : vector<8x16x8xf32>
    %c0_28 = arith.constant 0 : index
    %c0_29 = arith.constant 0 : index
    %c0_30 = arith.constant 0 : index
    %20 = vector.load %arg8[%c0_28, %c0_29, %c0_30] : memref<8x16x8xf32, #tpu.memory_space<vmem>>, vector<8x16x8xf32>
    tpu.vector_store %arg8[%c0_28, %c0_29, %c0_30], %19 {strides = array<i32>} : memref<8x16x8xf32, #tpu.memory_space<vmem>>, vector<8x16x8xf32>,
    %c0_31 = arith.constant 0 : index
    %c0_32 = arith.constant 0 : index
    %c0_33 = arith.constant 0 : index
    %21 = vector.load %arg8[%c0_31, %c0_32, %c0_33] : memref<8x16x8xf32, #tpu.memory_space<vmem>>, vector<8x16x8xf32>
    %22 = vector.extract_strided_slice %4 {offsets = [0, 2, 0], sizes = [8, 16, 8], strides = [1, 1, 1]} : vector<10x24x8xbf16> to vector<8x16x8xbf16>
    %c0_34 = arith.constant 0 : index
    %c2 = arith.constant 2 : index
    %c0_35 = arith.constant 0 : index
    %c0_36 = arith.constant 0 : index
    %23 = vector.load %arg4[%c0_34, %c2, %c0_35, %c0_36] : memref<3x3x8x8xbf16, #tpu.memory_space<vmem>>, vector<1x1x8x8xbf16>
    %24 = vector.shape_cast %23 : vector<1x1x8x8xbf16> to vector<8x8xbf16>
    "tpu.trace_start"() <{level = 10 : i32, message = "hwc,cd->hwd"}> : () -> ()
    %cst_37 = arith.constant dense<0.000000e+00> : vector<8x16x8xf32>
    %25 = tpu.matmul %22, %24, %cst_37 {dimension_numbers = #tpu.dot_dimension_numbers<[2], [0], [0, 1], [1], [0, 0, 0, 1, 1, 1], [], []>} : vector<8x16x8xbf16>, vector<8x8xbf16>, vector<8x16x8xf32> -> vector<8x16x8xf32>
    "tpu.trace_stop"() : () -> ()
    %26 = arith.addf %21, %25 : vector<8x16x8xf32>
    %c0_38 = arith.constant 0 : index
    %c0_39 = arith.constant 0 : index
    %c0_40 = arith.constant 0 : index
    %27 = vector.load %arg8[%c0_38, %c0_39, %c0_40] : memref<8x16x8xf32, #tpu.memory_space<vmem>>, vector<8x16x8xf32>
    tpu.vector_store %arg8[%c0_38, %c0_39, %c0_40], %26 {strides = array<i32>} : memref<8x16x8xf32, #tpu.memory_space<vmem>>, vector<8x16x8xf32>,
    %c0_41 = arith.constant 0 : index
    %c0_42 = arith.constant 0 : index
    %c0_43 = arith.constant 0 : index
    %28 = vector.load %arg8[%c0_41, %c0_42, %c0_43] : memref<8x16x8xf32, #tpu.memory_space<vmem>>, vector<8x16x8xf32>
    %29 = vector.extract_strided_slice %4 {offsets = [1, 0, 0], sizes = [8, 16, 8], strides = [1, 1, 1]} : vector<10x24x8xbf16> to vector<8x16x8xbf16>
    %c1_44 = arith.constant 1 : index
    %c0_45 = arith.constant 0 : index
    %c0_46 = arith.constant 0 : index
    %c0_47 = arith.constant 0 : index
    %30 = vector.load %arg4[%c1_44, %c0_45, %c0_46, %c0_47] : memref<3x3x8x8xbf16, #tpu.memory_space<vmem>>, vector<1x1x8x8xbf16>
    %31 = vector.shape_cast %30 : vector<1x1x8x8xbf16> to vector<8x8xbf16>
    "tpu.trace_start"() <{level = 10 : i32, message = "hwc,cd->hwd"}> : () -> ()
    %cst_48 = arith.constant dense<0.000000e+00> : vector<8x16x8xf32>
    %32 = tpu.matmul %29, %31, %cst_48 {dimension_numbers = #tpu.dot_dimension_numbers<[2], [0], [0, 1], [1], [0, 0, 0, 1, 1, 1], [], []>} : vector<8x16x8xbf16>, vector<8x8xbf16>, vector<8x16x8xf32> -> vector<8x16x8xf32>
    "tpu.trace_stop"() : () -> ()
    %33 = arith.addf %28, %32 : vector<8x16x8xf32>
    %c0_49 = arith.constant 0 : index
    %c0_50 = arith.constant 0 : index
    %c0_51 = arith.constant 0 : index
    %34 = vector.load %arg8[%c0_49, %c0_50, %c0_51] : memref<8x16x8xf32, #tpu.memory_space<vmem>>, vector<8x16x8xf32>
    tpu.vector_store %arg8[%c0_49, %c0_50, %c0_51], %33 {strides = array<i32>} : memref<8x16x8xf32, #tpu.memory_space<vmem>>, vector<8x16x8xf32>,
    %c0_52 = arith.constant 0 : index
    %c0_53 = arith.constant 0 : index
    %c0_54 = arith.constant 0 : index
    %35 = vector.load %arg8[%c0_52, %c0_53, %c0_54] : memref<8x16x8xf32, #tpu.memory_space<vmem>>, vector<8x16x8xf32>
    %36 = vector.extract_strided_slice %4 {offsets = [1, 1, 0], sizes = [8, 16, 8], strides = [1, 1, 1]} : vector<10x24x8xbf16> to vector<8x16x8xbf16>
    %c1_55 = arith.constant 1 : index
    %c1_56 = arith.constant 1 : index
    %c0_57 = arith.constant 0 : index
    %c0_58 = arith.constant 0 : index
    %37 = vector.load %arg4[%c1_55, %c1_56, %c0_57, %c0_58] : memref<3x3x8x8xbf16, #tpu.memory_space<vmem>>, vector<1x1x8x8xbf16>
    %38 = vector.shape_cast %37 : vector<1x1x8x8xbf16> to vector<8x8xbf16>
    "tpu.trace_start"() <{level = 10 : i32, message = "hwc,cd->hwd"}> : () -> ()
    %cst_59 = arith.constant dense<0.000000e+00> : vector<8x16x8xf32>
    %39 = tpu.matmul %36, %38, %cst_59 {dimension_numbers = #tpu.dot_dimension_numbers<[2], [0], [0, 1], [1], [0, 0, 0, 1, 1, 1], [], []>} : vector<8x16x8xbf16>, vector<8x8xbf16>, vector<8x16x8xf32> -> vector<8x16x8xf32>
    "tpu.trace_stop"() : () -> ()
    %40 = arith.addf %35, %39 : vector<8x16x8xf32>
    %c0_60 = arith.constant 0 : index
    %c0_61 = arith.constant 0 : index
    %c0_62 = arith.constant 0 : index
    %41 = vector.load %arg8[%c0_60, %c0_61, %c0_62] : memref<8x16x8xf32, #tpu.memory_space<vmem>>, vector<8x16x8xf32>
    tpu.vector_store %arg8[%c0_60, %c0_61, %c0_62], %40 {strides = array<i32>} : memref<8x16x8xf32, #tpu.memory_space<vmem>>, vector<8x16x8xf32>,
    %c0_63 = arith.constant 0 : index
    %c0_64 = arith.constant 0 : index
    %c0_65 = arith.constant 0 : index
    %42 = vector.load %arg8[%c0_63, %c0_64, %c0_65] : memref<8x16x8xf32, #tpu.memory_space<vmem>>, vector<8x16x8xf32>
    %43 = vector.extract_strided_slice %4 {offsets = [1, 2, 0], sizes = [8, 16, 8], strides = [1, 1, 1]} : vector<10x24x8xbf16> to vector<8x16x8xbf16>
    %c1_66 = arith.constant 1 : index
    %c2_67 = arith.constant 2 : index
    %c0_68 = arith.constant 0 : index
    %c0_69 = arith.constant 0 : index
    %44 = vector.load %arg4[%c1_66, %c2_67, %c0_68, %c0_69] : memref<3x3x8x8xbf16, #tpu.memory_space<vmem>>, vector<1x1x8x8xbf16>
    %45 = vector.shape_cast %44 : vector<1x1x8x8xbf16> to vector<8x8xbf16>
    "tpu.trace_start"() <{level = 10 : i32, message = "hwc,cd->hwd"}> : () -> ()
    %cst_70 = arith.constant dense<0.000000e+00> : vector<8x16x8xf32>
    %46 = tpu.matmul %43, %45, %cst_70 {dimension_numbers = #tpu.dot_dimension_numbers<[2], [0], [0, 1], [1], [0, 0, 0, 1, 1, 1], [], []>} : vector<8x16x8xbf16>, vector<8x8xbf16>, vector<8x16x8xf32> -> vector<8x16x8xf32>
    "tpu.trace_stop"() : () -> ()
    %47 = arith.addf %42, %46 : vector<8x16x8xf32>
    %c0_71 = arith.constant 0 : index
    %c0_72 = arith.constant 0 : index
    %c0_73 = arith.constant 0 : index
    %48 = vector.load %arg8[%c0_71, %c0_72, %c0_73] : memref<8x16x8xf32, #tpu.memory_space<vmem>>, vector<8x16x8xf32>
    tpu.vector_store %arg8[%c0_71, %c0_72, %c0_73], %47 {strides = array<i32>} : memref<8x16x8xf32, #tpu.memory_space<vmem>>, vector<8x16x8xf32>,
    %c0_74 = arith.constant 0 : index
    %c0_75 = arith.constant 0 : index
    %c0_76 = arith.constant 0 : index
    %49 = vector.load %arg8[%c0_74, %c0_75, %c0_76] : memref<8x16x8xf32, #tpu.memory_space<vmem>>, vector<8x16x8xf32>
    %50 = vector.extract_strided_slice %4 {offsets = [2, 0, 0], sizes = [8, 16, 8], strides = [1, 1, 1]} : vector<10x24x8xbf16> to vector<8x16x8xbf16>
    %c2_77 = arith.constant 2 : index
    %c0_78 = arith.constant 0 : index
    %c0_79 = arith.constant 0 : index
    %c0_80 = arith.constant 0 : index
    %51 = vector.load %arg4[%c2_77, %c0_78, %c0_79, %c0_80] : memref<3x3x8x8xbf16, #tpu.memory_space<vmem>>, vector<1x1x8x8xbf16>
    %52 = vector.shape_cast %51 : vector<1x1x8x8xbf16> to vector<8x8xbf16>
    "tpu.trace_start"() <{level = 10 : i32, message = "hwc,cd->hwd"}> : () -> ()
    %cst_81 = arith.constant dense<0.000000e+00> : vector<8x16x8xf32>
    %53 = tpu.matmul %50, %52, %cst_81 {dimension_numbers = #tpu.dot_dimension_numbers<[2], [0], [0, 1], [1], [0, 0, 0, 1, 1, 1], [], []>} : vector<8x16x8xbf16>, vector<8x8xbf16>, vector<8x16x8xf32> -> vector<8x16x8xf32>
    "tpu.trace_stop"() : () -> ()
    %54 = arith.addf %49, %53 : vector<8x16x8xf32>
    %c0_82 = arith.constant 0 : index
    %c0_83 = arith.constant 0 : index
    %c0_84 = arith.constant 0 : index
    %55 = vector.load %arg8[%c0_82, %c0_83, %c0_84] : memref<8x16x8xf32, #tpu.memory_space<vmem>>, vector<8x16x8xf32>
    tpu.vector_store %arg8[%c0_82, %c0_83, %c0_84], %54 {strides = array<i32>} : memref<8x16x8xf32, #tpu.memory_space<vmem>>, vector<8x16x8xf32>,
    %c0_85 = arith.constant 0 : index
    %c0_86 = arith.constant 0 : index
    %c0_87 = arith.constant 0 : index
    %56 = vector.load %arg8[%c0_85, %c0_86, %c0_87] : memref<8x16x8xf32, #tpu.memory_space<vmem>>, vector<8x16x8xf32>
    %57 = vector.extract_strided_slice %4 {offsets = [2, 1, 0], sizes = [8, 16, 8], strides = [1, 1, 1]} : vector<10x24x8xbf16> to vector<8x16x8xbf16>
    %c2_88 = arith.constant 2 : index
    %c1_89 = arith.constant 1 : index
    %c0_90 = arith.constant 0 : index
    %c0_91 = arith.constant 0 : index
    %58 = vector.load %arg4[%c2_88, %c1_89, %c0_90, %c0_91] : memref<3x3x8x8xbf16, #tpu.memory_space<vmem>>, vector<1x1x8x8xbf16>
    %59 = vector.shape_cast %58 : vector<1x1x8x8xbf16> to vector<8x8xbf16>
    "tpu.trace_start"() <{level = 10 : i32, message = "hwc,cd->hwd"}> : () -> ()
    %cst_92 = arith.constant dense<0.000000e+00> : vector<8x16x8xf32>
    %60 = tpu.matmul %57, %59, %cst_92 {dimension_numbers = #tpu.dot_dimension_numbers<[2], [0], [0, 1], [1], [0, 0, 0, 1, 1, 1], [], []>} : vector<8x16x8xbf16>, vector<8x8xbf16>, vector<8x16x8xf32> -> vector<8x16x8xf32>
    "tpu.trace_stop"() : () -> ()
    %61 = arith.addf %56, %60 : vector<8x16x8xf32>
    %c0_93 = arith.constant 0 : index
    %c0_94 = arith.constant 0 : index
    %c0_95 = arith.constant 0 : index
    %62 = vector.load %arg8[%c0_93, %c0_94, %c0_95] : memref<8x16x8xf32, #tpu.memory_space<vmem>>, vector<8x16x8xf32>
    tpu.vector_store %arg8[%c0_93, %c0_94, %c0_95], %61 {strides = array<i32>} : memref<8x16x8xf32, #tpu.memory_space<vmem>>, vector<8x16x8xf32>,
    %c0_96 = arith.constant 0 : index
    %c0_97 = arith.constant 0 : index
    %c0_98 = arith.constant 0 : index
    %63 = vector.load %arg8[%c0_96, %c0_97, %c0_98] : memref<8x16x8xf32, #tpu.memory_space<vmem>>, vector<8x16x8xf32>
    %64 = vector.extract_strided_slice %4 {offsets = [2, 2, 0], sizes = [8, 16, 8], strides = [1, 1, 1]} : vector<10x24x8xbf16> to vector<8x16x8xbf16>
    %c2_99 = arith.constant 2 : index
    %c2_100 = arith.constant 2 : index
    %c0_101 = arith.constant 0 : index
    %c0_102 = arith.constant 0 : index
    %65 = vector.load %arg4[%c2_99, %c2_100, %c0_101, %c0_102] : memref<3x3x8x8xbf16, #tpu.memory_space<vmem>>, vector<1x1x8x8xbf16>
    %66 = vector.shape_cast %65 : vector<1x1x8x8xbf16> to vector<8x8xbf16>
    "tpu.trace_start"() <{level = 10 : i32, message = "hwc,cd->hwd"}> : () -> ()
    %cst_103 = arith.constant dense<0.000000e+00> : vector<8x16x8xf32>
    %67 = tpu.matmul %64, %66, %cst_103 {dimension_numbers = #tpu.dot_dimension_numbers<[2], [0], [0, 1], [1], [0, 0, 0, 1, 1, 1], [], []>} : vector<8x16x8xbf16>, vector<8x8xbf16>, vector<8x16x8xf32> -> vector<8x16x8xf32>
    "tpu.trace_stop"() : () -> ()
    %68 = arith.addf %63, %67 : vector<8x16x8xf32>
    %c0_104 = arith.constant 0 : index
    %c0_105 = arith.constant 0 : index
    %c0_106 = arith.constant 0 : index
    %69 = vector.load %arg8[%c0_104, %c0_105, %c0_106] : memref<8x16x8xf32, #tpu.memory_space<vmem>>, vector<8x16x8xf32>
    tpu.vector_store %arg8[%c0_104, %c0_105, %c0_106], %68 {strides = array<i32>} : memref<8x16x8xf32, #tpu.memory_space<vmem>>, vector<8x16x8xf32>,
    %c0_107 = arith.constant 0 : index
    %c0_108 = arith.constant 0 : index
    %c0_109 = arith.constant 0 : index
    %70 = vector.load %arg8[%c0_107, %c0_108, %c0_109] : memref<8x16x8xf32, #tpu.memory_space<vmem>>, vector<8x16x8xf32>
    %c0_110 = arith.constant 0 : index
    %c0_111 = arith.constant 0 : index
    %71 = vector.load %arg5[%c0_110, %c0_111] : memref<1x8xf32, #tpu.memory_space<vmem>>, vector<1x8xf32>
    %72 = vector.shape_cast %71 : vector<1x8xf32> to vector<8xf32>
    %73 = vector.shape_cast %72 : vector<8xf32> to vector<1x1x8xf32>
    %74 = vector.broadcast %73 : vector<1x1x8xf32> to vector<8x16x8xf32>
    %75 = arith.mulf %70, %74 : vector<8x16x8xf32>
    %c0_112 = arith.constant 0 : index
    %c0_113 = arith.constant 0 : index
    %76 = vector.load %arg6[%c0_112, %c0_113] : memref<1x8xf32, #tpu.memory_space<vmem>>, vector<1x8xf32>
    %77 = vector.shape_cast %76 : vector<1x8xf32> to vector<8xf32>
    %78 = vector.shape_cast %77 : vector<8xf32> to vector<1x1x8xf32>
    %79 = vector.broadcast %78 : vector<1x1x8xf32> to vector<8x16x8xf32>
    %80 = arith.addf %75, %79 : vector<8x16x8xf32>
    %cst_114 = arith.constant 1.000000e-01 : f32
    %81 = vector.broadcast %cst_114 : f32 to vector<8x16x8xf32>
    %82 = arith.mulf %81, %80 : vector<8x16x8xf32>
    %83 = arith.maximumf %80, %82 : vector<8x16x8xf32>
    %c0_115 = arith.constant 0 : index
    %c0_116 = arith.constant 0 : index
    %c0_117 = arith.constant 0 : index
    %c0_118 = arith.constant 0 : index
    %84 = vector.load %arg7[%c0_115, %c0_116, %c0_117, %c0_118] : memref<1x8x16x8xf32, #tpu.memory_space<vmem>>, vector<1x8x16x8xf32>
    %85 = vector.shape_cast %84 : vector<1x8x16x8xf32> to vector<8x16x8xf32>
    %86 = vector.shape_cast %83 : vector<8x16x8xf32> to vector<1x8x16x8xf32>
    tpu.vector_store %arg7[%c0_115, %c0_116, %c0_117, %c0_118], %86 {strides = array<i32>} : memref<1x8x16x8xf32, #tpu.memory_space<vmem>>, vector<1x8x16x8xf32>,
    return
  }
  func.func @transform_0(%arg0: i32, %arg1: i32) -> (i32, i32, i32, i32) {
    %c0_i32 = arith.constant 0 : i32
    %c0_i32_0 = arith.constant 0 : i32
    %c0_i32_1 = arith.constant 0 : i32
    return %arg0, %arg1, %c0_i32, %c0_i32_0 : i32, i32, i32, i32
  }
  func.func @transform_1(%arg0: i32, %arg1: i32) -> (i32, i32, i32, i32) {
    %c1_i32 = arith.constant 1 : i32
    %0 = arith.addi %arg1, %c1_i32 : i32
    %c4_i32 = arith.constant 4 : i32
    %1 = arith.muli %0, %c4_i32 : i32
    %c0_i32 = arith.constant 0 : i32
    %c0_i32_0 = arith.constant 0 : i32
    %c0_i32_1 = arith.constant 0 : i32
    return %arg0, %1, %c0_i32, %c0_i32_0 : i32, i32, i32, i32
  }
  func.func @transform_2(%arg0: i32, %arg1: i32) -> (i32, i32, i32, i32) {
    %c0_i32 = arith.constant 0 : i32
    %c0_i32_0 = arith.constant 0 : i32
    %c0_i32_1 = arith.constant 0 : i32
    %c0_i32_2 = arith.constant 0 : i32
    %c0_i32_3 = arith.constant 0 : i32
    return %c0_i32, %c0_i32_0, %c0_i32_1, %c0_i32_2 : i32, i32, i32, i32
  }
  func.func @transform_3(%arg0: i32, %arg1: i32) -> (i32, i32) {
    %c0_i32 = arith.constant 0 : i32
    %c0_i32_0 = arith.constant 0 : i32
    %c0_i32_1 = arith.constant 0 : i32
    return %c0_i32, %c0_i32_0 : i32, i32
  }
  func.func @transform_4(%arg0: i32, %arg1: i32) -> (i32, i32) {
    %c0_i32 = arith.constant 0 : i32
    %c0_i32_0 = arith.constant 0 : i32
    %c0_i32_1 = arith.constant 0 : i32
    return %c0_i32, %c0_i32_0 : i32, i32
  }
  func.func @transform_5(%arg0: i32, %arg1: i32) -> (i32, i32, i32, i32) {
    %c0_i32 = arith.constant 0 : i32
    %c0_i32_0 = arith.constant 0 : i32
    %c0_i32_1 = arith.constant 0 : i32
    return %arg0, %arg1, %c0_i32, %c0_i32_0 : i32, i32, i32, i32
  }
}

</mosaic_0001>

<llo_original>
// kernel: tpu_custom_call.1
$region0: #{tpu_custom_call.1}
  #allocation0 [shape = 'u32[]', space=smem, size = 0x4, offset = 0x4, fixed_abs, tag = 'smem constant byte address 0x4 - core index']
  #allocation1 [shape = 'u32[144,128]{1,0:T(1,128)}', space=vmem, size = 0x12000, scoped, tag = 'internal scratch']
  #allocation2 [shape = 'f32[8,16,8]{2,1,0:T(8,128)}', space=vmem, size = 0x10000, scoped, tag = 'scratch operand']
  %s0 = inlined_call_operand.vmem [shape: bf16[2,18,24,8], index: 0, kind: input, shape index: {}]
  %s1 = inlined_call_operand.vmem [shape: bf16[2,18,24,8], index: 1, kind: input, shape index: {}]
  %s2 = inlined_call_operand.vmem [shape: bf16[3,3,8,8], index: 2, kind: input, shape index: {}]
  %s3 = inlined_call_operand.vmem [shape: f32[1,8], index: 3, kind: input, shape index: {}]
  %s4 = inlined_call_operand.vmem [shape: f32[1,8], index: 4, kind: input, shape index: {}]
  %s5 = inlined_call_operand.vmem [shape: f32[2,16,16,8], index: 5, kind: output, shape index: {}]
  %s6 = sld [smem:[#allocation0]]
  $region53: #{tpu_custom_call.1} parent=0
    _
  %s8 = ssub.s32 1, %s6
  %s9 = scalar_select 0, %s8, %s6
  loop: start=0, step=1, limit=6
  $region2: #{tpu_custom_call.1} parent=0 // loop_pre_header
    _
  $region3: #{tpu_custom_call.1} parent=0 // loop_header
    %s11 = sphi 0, %s15
    %p12 = scmp.ge.s32.totalorder %s11, 6
    %s18 = sphi 0, %s30
    %s19 = sphi 0, %s26
    %s20 = sphi 0, %s18
    %s21 = sphi 0, %s19
    %s22 = sphi 0, %s20
    %s23 = sphi 0, %s21
    %s35 = sphi 0, %s37
    %s38 = sphi 0, %s35
    %s39 = sphi 0, %s38
    %s55 = sphi 0, %s39
    %s67 = sphi 0, %s69
    %s70 = sphi 0, %s67
    %s71 = sphi 0, %s70
    %s87 = sphi 0, %s71
    %s91 = sphi 0, %s91
    %s93 = sphi 0, %s91
    %s94 = sphi 0, %s93
    %s108 = sphi 0, %s94
    %s112 = sphi 0, %s112
    %s114 = sphi 0, %s112
    %s115 = sphi 0, %s114
    %s129 = sphi 0, %s115
    %s133 = sphi 0, %s133
    %s135 = sphi 0, %s133
    %s136 = sphi 0, %s135
    %s150 = sphi 0, %s136
    %s158 = sphi 0, %s160
    %s161 = sphi 0, %s158
    %s162 = sphi 0, %s161
    %s178 = sphi 0, %s162
  $region4: #{tpu_custom_call.1} parent=0 // loop_header_branch
    %14 = sbr.rel (%p12) target = $region8
  $region5: #{tpu_custom_call.1} parent=0 // loop_body
    %s16 = ssub.s32 %s11, 1
    %s17 = ssub.s32 %s11, 2
    %s24 = sadd.s32 1, %s19
    %p25 = scmp.ge.s32.totalorder %s24, 2
    %s26 = scalar_select %p25, 0, %s24
    %s27 = sadd.s32 1, %s18
    %s28 = scalar_select %p25, %s27, %s18
    %p29 = scmp.ge.s32.totalorder %s28, 2
    %s30 = scalar_select %p29, 0, %s28
    %s31 = ssub.s32 %s18, %s30
    %s32 = ssub.s32 %s19, %s26
    %s33 = sor.u32 %s31, %s32
    %p34 = scmp.eq.s32.totalorder %s33, 0
    %s36 = sadd.s32 %s35, 1
    %s37 = scalar_select %p34, %s35, %s36
    %p40 = pneg %p34
    %p41 = scmp.eq.s32.totalorder %s11, 3
    %p42 = por %p40, %p41
    %p43 = scmp.ne.s32.totalorder %s35, %s38
    %p44 = scmp.eq.s32.totalorder %s11, 0
    %p45 = por %p43, %p44
    %p46 = scmp.ne.s32.totalorder %s35, %s38
    %p47 = scmp.eq.s32.totalorder %s16, 3
    %p48 = por %p46, %p47
    %p49 = scmp.ne.s32.totalorder %s38, %s39
    %p50 = scmp.eq.s32.totalorder %s16, 0
    %p51 = por %p49, %p50
    %p52 = scmp.ne.s32.totalorder %s38, %s39
    %p53 = scmp.eq.s32.totalorder %s17, 3
    %p54 = por %p52, %p53
    %p56 = scmp.ne.s32.totalorder %s39, %s55
    %p57 = scmp.eq.s32.totalorder %s17, 0
    %p58 = por %p56, %p57
    %s59 = sadd.s32 %s19, 1
    %s60 = smul.u32 %s59, 4
    %s61 = sadd.s32 %s26, 1
    %s62 = smul.u32 %s61, 4
    %s63 = ssub.s32 %s18, %s30
    %s64 = ssub.s32 %s60, %s62
    %s65 = sor.u32 %s63, %s64
    %p66 = scmp.eq.s32.totalorder %s65, 0
    %s68 = sadd.s32 %s67, 1
    %s69 = scalar_select %p66, %s67, %s68
    %p72 = pneg %p66
    %p73 = scmp.eq.s32.totalorder %s11, 3
    %p74 = por %p72, %p73
    %p75 = scmp.ne.s32.totalorder %s67, %s70
    %p76 = scmp.eq.s32.totalorder %s11, 0
    %p77 = por %p75, %p76
    %p78 = scmp.ne.s32.totalorder %s67, %s70
    %p79 = scmp.eq.s32.totalorder %s16, 3
    %p80 = por %p78, %p79
    %p81 = scmp.ne.s32.totalorder %s70, %s71
    %p82 = scmp.eq.s32.totalorder %s16, 0
    %p83 = por %p81, %p82
    %p84 = scmp.ne.s32.totalorder %s70, %s71
    %p85 = scmp.eq.s32.totalorder %s17, 3
    %p86 = por %p84, %p85
    %p88 = scmp.ne.s32.totalorder %s71, %s87
    %p89 = scmp.eq.s32.totalorder %s17, 0
    %p90 = por %p88, %p89
    %s92 = sadd.s32 %s91, 1
    %p95 = scmp.eq.s32.totalorder %s11, 3
    %p96 = scmp.ne.s32.totalorder %s91, %s93
    %p97 = scmp.eq.s32.totalorder %s11, 0
    %p98 = por %p96, %p97
    %p99 = scmp.ne.s32.totalorder %s91, %s93
    %p100 = scmp.eq.s32.totalorder %s16, 3
    %p101 = por %p99, %p100
    %p102 = scmp.ne.s32.totalorder %s93, %s94
    %p103 = scmp.eq.s32.totalorder %s16, 0
    %p104 = por %p102, %p103
    %p105 = scmp.ne.s32.totalorder %s93, %s94
    %p106 = scmp.eq.s32.totalorder %s17, 3
    %p107 = por %p105, %p106
    %p109 = scmp.ne.s32.totalorder %s94, %s108
    %p110 = scmp.eq.s32.totalorder %s17, 0
    %p111 = por %p109, %p110
    %s113 = sadd.s32 %s112, 1
    %p116 = scmp.eq.s32.totalorder %s11, 3
    %p117 = scmp.ne.s32.totalorder %s112, %s114
    %p118 = scmp.eq.s32.totalorder %s11, 0
    %p119 = por %p117, %p118
    %p120 = scmp.ne.s32.totalorder %s112, %s114
    %p121 = scmp.eq.s32.totalorder %s16, 3
    %p122 = por %p120, %p121
    %p123 = scmp.ne.s32.totalorder %s114, %s115
    %p124 = scmp.eq.s32.totalorder %s16, 0
    %p125 = por %p123, %p124
    %p126 = scmp.ne.s32.totalorder %s114, %s115
    %p127 = scmp.eq.s32.totalorder %s17, 3
    %p128 = por %p126, %p127
    %p130 = scmp.ne.s32.totalorder %s115, %s129
    %p131 = scmp.eq.s32.totalorder %s17, 0
    %p132 = por %p130, %p131
    %s134 = sadd.s32 %s133, 1
    %p137 = scmp.eq.s32.totalorder %s11, 3
    %p138 = scmp.ne.s32.totalorder %s133, %s135
    %p139 = scmp.eq.s32.totalorder %s11, 0
    %p140 = por %p138, %p139
    %p141 = scmp.ne.s32.totalorder %s133, %s135
    %p142 = scmp.eq.s32.totalorder %s16, 3
    %p143 = por %p141, %p142
    %p144 = scmp.ne.s32.totalorder %s135, %s136
    %p145 = scmp.eq.s32.totalorder %s16, 0
    %p146 = por %p144, %p145
    %p147 = scmp.ne.s32.totalorder %s135, %s136
    %p148 = scmp.eq.s32.totalorder %s17, 3
    %p149 = por %p147, %p148
    %p151 = scmp.ne.s32.totalorder %s136, %s150
    %p152 = scmp.eq.s32.totalorder %s17, 0
    %p153 = por %p151, %p152
    %s154 = ssub.s32 %s18, %s30
    %s155 = ssub.s32 %s19, %s26
    %s156 = sor.u32 %s154, %s155
    %p157 = scmp.eq.s32.totalorder %s156, 0
    %s159 = sadd.s32 %s158, 1
    %s160 = scalar_select %p157, %s158, %s159
    %p163 = pneg %p157
    %p164 = scmp.eq.s32.totalorder %s11, 3
    %p165 = por %p163, %p164
    %p166 = scmp.ne.s32.totalorder %s158, %s161
    %p167 = scmp.eq.s32.totalorder %s11, 0
    %p168 = por %p166, %p167
    %p169 = scmp.ne.s32.totalorder %s158, %s161
    %p170 = scmp.eq.s32.totalorder %s16, 3
    %p171 = por %p169, %p170
    %p172 = scmp.ne.s32.totalorder %s161, %s162
    %p173 = scmp.eq.s32.totalorder %s16, 0
    %p174 = por %p172, %p173
    %p175 = scmp.ne.s32.totalorder %s161, %s162
    %p176 = scmp.eq.s32.totalorder %s17, 3
    %p177 = por %p175, %p176
    %p179 = scmp.ne.s32.totalorder %s162, %s178
    %p180 = scmp.eq.s32.totalorder %s17, 0
    %p181 = por %p179, %p180
    %p182 = scmp.le.s32.totalorder 1, %s11
    %p183 = scmp.lt.s32.totalorder %s11, 5
    %p184 = pnand %p182, %p183
    %p185 = pneg %p184
    // Predicated region
    $region9: #{tpu_custom_call.1} parent=5 // pred_check
      _
    $region10: #{tpu_custom_call.1} parent=5 // pred_check_branch
      %187 = sbr.rel (%p184) target = $region12
    $region11: #{tpu_custom_call.1} parent=5 // pred_region
      %s188 = ssub.s32 %s11, 1
      // Predicated region
      $region13: #{tpu_custom_call.1} parent=11 // pred_check
        %p189 = pneg %p104
      $region14: #{tpu_custom_call.1} parent=11 // pred_check_branch
        %191 = sbr.rel (%p189) target = $region16
      $region15: #{tpu_custom_call.1} parent=11 // pred_region
        _
      $region16: #{tpu_custom_call.1} parent=11 // pred_fallthru
        _
      // Predicated region
      $region17: #{tpu_custom_call.1} parent=11 // pred_check
        %p192 = pneg %p125
      $region18: #{tpu_custom_call.1} parent=11 // pred_check_branch
        %194 = sbr.rel (%p192) target = $region20
      $region19: #{tpu_custom_call.1} parent=11 // pred_region
        _
      $region20: #{tpu_custom_call.1} parent=11 // pred_fallthru
        _
      // Predicated region
      $region21: #{tpu_custom_call.1} parent=11 // pred_check
        %p195 = pneg %p146
      $region22: #{tpu_custom_call.1} parent=11 // pred_check_branch
        %197 = sbr.rel (%p195) target = $region24
      $region23: #{tpu_custom_call.1} parent=11 // pred_region
        _
      $region24: #{tpu_custom_call.1} parent=11 // pred_fallthru
        _
    $region12: #{tpu_custom_call.1} parent=5 // pred_fallthru
      _
    %p198 = scmp.lt.s32.totalorder %s11, 4
    // Predicated region
    $region25: #{tpu_custom_call.1} parent=5 // pred_check
      %p199 = pneg %p198
    $region26: #{tpu_custom_call.1} parent=5 // pred_check_branch
      %201 = sbr.rel (%p199) target = $region28
    $region27: #{tpu_custom_call.1} parent=5 // pred_region
      // Predicated region
      $region29: #{tpu_custom_call.1} parent=27 // pred_check
        %p202 = pneg %p45
      $region30: #{tpu_custom_call.1} parent=27 // pred_check_branch
        %204 = sbr.rel (%p202) target = $region32
      $region31: #{tpu_custom_call.1} parent=27 // pred_region
        %s205 = smul.u32 8, %s19
        %s206 = ssub.s32 18, %s205
        %p207 = scmp.lt.s32.totalorder %s206, 8
        %s208 = scalar_select %p207, %s206, 8
        %s209 = smul.u32 64, %s208
        %s210 = smul.u32 %s209, 3
        %p211 = scmp.lt.s32.totalorder %s18, 1
        %s212 = scalar_select %p211, %s18, 1
        %p213 = scmp.lt.s32.totalorder %s205, 17
        %s214 = scalar_select %p213, %s205, 17
        %s215 = smul.addr %s214, 3
        %s216 = smul.addr %s212, 54
        %s217 = sadd.s32 %s215, %s216
        %s218 = smul.addr %s217, 4
        %s219 = scalar_lea.vmem %s0, %s218
        %s220 = smul.u32 8, %s19
        %s221 = ssub.s32 18, %s220
        %p222 = scmp.lt.s32.totalorder %s221, 8
        %s223 = scalar_select %p222, %s221, 8
        %s224 = smul.u32 64, %s223
        %s225 = smul.u32 %s224, 3
      $region32: #{tpu_custom_call.1} parent=27 // pred_fallthru
        _
      // Predicated region
      $region33: #{tpu_custom_call.1} parent=27 // pred_check
        %p226 = pneg %p77
      $region34: #{tpu_custom_call.1} parent=27 // pred_check_branch
        %228 = sbr.rel (%p226) target = $region36
      $region35: #{tpu_custom_call.1} parent=27 // pred_region
        %s229 = sadd.s32 %s19, 1
        %s230 = smul.u32 %s229, 4
        %s231 = smul.u32 2, %s230
        %p232 = scmp.lt.s32.totalorder %s18, 1
        %s233 = scalar_select %p232, %s18, 1
        %p234 = scmp.lt.s32.totalorder %s231, 17
        %s235 = scalar_select %p234, %s231, 17
        %s236 = smul.addr %s235, 3
        %s237 = smul.addr %s233, 54
        %s238 = sadd.s32 %s236, %s237
        %s239 = smul.addr %s238, 4
        %s240 = scalar_lea.vmem %s1, %s239
        %s241 = sadd.s32 %s19, 1
        %s242 = smul.u32 %s241, 4
        %s243 = smul.u32 2, %s242
      $region36: #{tpu_custom_call.1} parent=27 // pred_fallthru
        _
    $region28: #{tpu_custom_call.1} parent=5 // pred_fallthru
      _
    %p244 = scmp.le.s32.totalorder 1, %s11
    %p245 = scmp.lt.s32.totalorder %s11, 5
    %p246 = pnand %p244, %p245
    %p247 = pneg %p246
    // Predicated region
    $region37: #{tpu_custom_call.1} parent=5 // pred_check
      _
    $region38: #{tpu_custom_call.1} parent=5 // pred_check_branch
      %249 = sbr.rel (%p246) target = $region40
    $region39: #{tpu_custom_call.1} parent=5 // pred_region
      %s250 = ssub.s32 %s11, 1
      %s251 = smul.u32 8, %s21
      %s252 = ssub.s32 18, %s251
      %p253 = scmp.lt.s32.totalorder %s252, 8
      %s254 = scalar_select %p253, %s252, 8
      %s255 = smul.u32 64, %s254
      %s256 = smul.u32 %s255, 3
      %p257 = scmp.lt.s32.totalorder %s20, 1
      %s258 = scalar_select %p257, %s20, 1
      %p259 = scmp.lt.s32.totalorder %s251, 17
      %s260 = scalar_select %p259, %s251, 17
      %s261 = smul.addr %s260, 3
      %s262 = smul.addr %s258, 54
      %s263 = sadd.s32 %s261, %s262
      %s264 = smul.addr %s263, 4
      %s265 = scalar_lea.vmem %s0, %s264
      %p266 = pneg %p51
      %p267 = pneg %p48
      %s268 = sadd.s32 %s21, 1
      %s269 = smul.u32 %s268, 4
      %s270 = smul.u32 2, %s269
      %p271 = scmp.lt.s32.totalorder %s20, 1
      %s272 = scalar_select %p271, %s20, 1
      %p273 = scmp.lt.s32.totalorder %s270, 17
      %s274 = scalar_select %p273, %s270, 17
      %s275 = smul.addr %s274, 3
      %s276 = smul.addr %s272, 54
      %s277 = sadd.s32 %s275, %s276
      %s278 = smul.addr %s277, 4
      %s279 = scalar_lea.vmem %s1, %s278
      %p280 = pneg %p83
      %p281 = pneg %p80
      %p282 = pneg %p104
      %p283 = pneg %p101
      %p284 = pneg %p125
      %p285 = pneg %p122
      %p286 = pneg %p146
      %p287 = pneg %p143
      %p288 = pneg %p174
      %p289 = pneg %p171
      %s290 = smul.u32 8, %s21
      %p291 = scmp.lt.s32.totalorder %s20, 1
      %s292 = scalar_select %p291, %s20, 1
      %p293 = scmp.lt.s32.totalorder %s290, 15
      %s294 = scalar_select %p293, %s290, 15
      %s295 = smul.addr %s294, 2
      %s296 = smul.addr %s292, 32
      %s297 = sadd.s32 %s295, %s296
      %s298 = smul.addr %s297, 8
      %s299 = scalar_lea.vmem %s5, %s298
      %s300 = smul.u32 8, %s21
      %s301 = ssub.s32 18, %s300
      %p302 = scmp.lt.s32.totalorder %s301, 8
      %s303 = scalar_select %p302, %s301, 8
      %s304 = smul.u32 64, %s303
      %s305 = smul.u32 %s304, 3
      %p306 = scmp.lt.s32.totalorder %s20, 1
      %s307 = scalar_select %p306, %s20, 1
      %p308 = scmp.lt.s32.totalorder %s300, 17
      %s309 = scalar_select %p308, %s300, 17
      %s310 = smul.addr %s309, 3
      %s311 = smul.addr %s307, 54
      %s312 = sadd.s32 %s310, %s311
      %s313 = smul.addr %s312, 4
      %s314 = scalar_lea.vmem %s0, %s313
      %s315 = smul.u32 8, %s21
      %s316 = ssub.s32 18, %s315
      %p317 = scmp.lt.s32.totalorder %s316, 8
      %s318 = scalar_select %p317, %s316, 8
      %s319 = smul.u32 64, %s318
      %s320 = smul.u32 %s319, 3
      %s321 = sadd.s32 %s21, 1
      %s322 = smul.u32 %s321, 4
      %s323 = smul.u32 2, %s322
      %p324 = scmp.lt.s32.totalorder %s20, 1
      %s325 = scalar_select %p324, %s20, 1
      %p326 = scmp.lt.s32.totalorder %s323, 17
      %s327 = scalar_select %p326, %s323, 17
      %s328 = smul.addr %s327, 3
      %s329 = smul.addr %s325, 54
      %s330 = sadd.s32 %s328, %s329
      %s331 = smul.addr %s330, 4
      %s332 = scalar_lea.vmem %s1, %s331
      %s333 = sadd.s32 %s21, 1
      %s334 = smul.u32 %s333, 4
      %s335 = smul.u32 2, %s334
      %s336 = smul.u32 8, %s21
      %p337 = scmp.lt.s32.totalorder %s20, 1
      %s338 = scalar_select %p337, %s20, 1
      %p339 = scmp.lt.s32.totalorder %s336, 15
      %s340 = scalar_select %p339, %s336, 15
      %s341 = smul.addr %s340, 2
      %s342 = smul.addr %s338, 32
      %s343 = sadd.s32 %s341, %s342
      %s344 = smul.addr %s343, 8
      %s345 = scalar_lea.vmem %s5, %s344
      %s346 = smul.u32 8, %s21
      %v348 = vld [vmem:[%s314] sm:$0xf]
      %v349 = vld [vmem:[%s314 + $0x4] sm:$0xf]
      %v350 = vld [vmem:[%s314 + $0x8] sm:$0xf]
      %v351 = vld [vmem:[%s314 + $0xc] sm:$0xf]
      %v352 = vld [vmem:[%s314 + $0x10] sm:$0xf]
      %v353 = vld [vmem:[%s314 + $0x14] sm:$0xf]
      %v354 = vld [vmem:[%s314 + $0x18] sm:$0xf]
      %v355 = vld [vmem:[%s314 + $0x1c] sm:$0xf]
      %v356 = vld [vmem:[%s314 + $0x20] sm:$0xf]
      %v357 = vld [vmem:[%s314 + $0x24] sm:$0xf]
      %v358 = vld [vmem:[%s314 + $0x28] sm:$0xf]
      %v359 = vld [vmem:[%s314 + $0x2c] sm:$0xf]
      %v360 = vld [vmem:[%s314 + $0x30] sm:$0xf]
      %v361 = vld [vmem:[%s314 + $0x34] sm:$0xf]
      %v362 = vld [vmem:[%s314 + $0x38] sm:$0xf]
      %v363 = vld [vmem:[%s314 + $0x3c] sm:$0xf]
      %v364 = vld [vmem:[%s314 + $0x40] sm:$0xf]
      %v365 = vld [vmem:[%s314 + $0x44] sm:$0xf]
      %v366 = vld [vmem:[%s314 + $0x48] sm:$0xf]
      %v367 = vld [vmem:[%s314 + $0x4c] sm:$0xf]
      %v368 = vld [vmem:[%s314 + $0x50] sm:$0xf]
      %v369 = vld [vmem:[%s314 + $0x54] sm:$0xf]
      %v370 = vld [vmem:[%s314 + $0x58] sm:$0xf]
      %v371 = vld [vmem:[%s314 + $0x5c] sm:$0xf]
      %v372 = vld [vmem:[%s332] sm:$0xf]
      %v373 = vld [vmem:[%s332 + $0x4] sm:$0xf]
      %v374 = vld [vmem:[%s332 + $0x8] sm:$0xf]
      %v375 = vld [vmem:[%s332 + $0xc] sm:$0xf]
      %v376 = vld [vmem:[%s332 + $0x10] sm:$0xf]
      %v377 = vld [vmem:[%s332 + $0x14] sm:$0xf]
      %vm378 = vcmask 64512
      %379 = vst.msk [vmem:[#allocation2] sm:$0xff] %vm378, 0.0
      %380 = vst.msk [vmem:[#allocation2 + $0x8] sm:$0xff] %vm378, 0.0
      %381 = vst.msk [vmem:[#allocation2 + $0x10] sm:$0xff] %vm378, 0.0
      %382 = vst.msk [vmem:[#allocation2 + $0x18] sm:$0xff] %vm378, 0.0
      %383 = vst.msk [vmem:[#allocation2 + $0x20] sm:$0xff] %vm378, 0.0
      %384 = vst.msk [vmem:[#allocation2 + $0x28] sm:$0xff] %vm378, 0.0
      %385 = vst.msk [vmem:[#allocation2 + $0x30] sm:$0xff] %vm378, 0.0
      %386 = vst.msk [vmem:[#allocation2 + $0x38] sm:$0xff] %vm378, 0.0
      %387 = vst.msk [vmem:[#allocation2 + $0x40] sm:$0xff] %vm378, 0.0
      %388 = vst.msk [vmem:[#allocation2 + $0x48] sm:$0xff] %vm378, 0.0
      %389 = vst.msk [vmem:[#allocation2 + $0x50] sm:$0xff] %vm378, 0.0
      %390 = vst.msk [vmem:[#allocation2 + $0x58] sm:$0xff] %vm378, 0.0
      %391 = vst.msk [vmem:[#allocation2 + $0x60] sm:$0xff] %vm378, 0.0
      %392 = vst.msk [vmem:[#allocation2 + $0x68] sm:$0xff] %vm378, 0.0
      %393 = vst.msk [vmem:[#allocation2 + $0x70] sm:$0xff] %vm378, 0.0
      %394 = vst.msk [vmem:[#allocation2 + $0x78] sm:$0xff] %vm378, 0.0
      %v395 = vld [vmem:[#allocation2] sm:$0xff]
      %v396 = vld [vmem:[#allocation2 + $0x8] sm:$0xff]
      %v397 = vld [vmem:[#allocation2 + $0x10] sm:$0xff]
      %v398 = vld [vmem:[#allocation2 + $0x18] sm:$0xff]
      %v399 = vld [vmem:[#allocation2 + $0x20] sm:$0xff]
      %v400 = vld [vmem:[#allocation2 + $0x28] sm:$0xff]
      %v401 = vld [vmem:[#allocation2 + $0x30] sm:$0xff]
      %v402 = vld [vmem:[#allocation2 + $0x38] sm:$0xff]
      %v403 = vld [vmem:[#allocation2 + $0x40] sm:$0xff]
      %v404 = vld [vmem:[#allocation2 + $0x48] sm:$0xff]
      %v405 = vld [vmem:[#allocation2 + $0x50] sm:$0xff]
      %v406 = vld [vmem:[#allocation2 + $0x58] sm:$0xff]
      %v407 = vld [vmem:[#allocation2 + $0x60] sm:$0xff]
      %v408 = vld [vmem:[#allocation2 + $0x68] sm:$0xff]
      %v409 = vld [vmem:[#allocation2 + $0x70] sm:$0xff]
      %v410 = vld [vmem:[#allocation2 + $0x78] sm:$0xff]
      %v411 = vld [vmem:[%s2] sm:$0xf]
      %v428 = vunpack.c.l.b16 %v348
      %v429 = vunpack.c.l.b16 %v349
      %v430 = vunpack.c.l.b16 %v351
      %v431 = vunpack.c.l.b16 %v352
      %v432 = vunpack.c.l.b16 %v354
      %v433 = vunpack.c.l.b16 %v355
      %v434 = vunpack.c.l.b16 %v357
      %v435 = vunpack.c.l.b16 %v358
      %v436 = vunpack.c.l.b16 %v360
      %v437 = vunpack.c.l.b16 %v361
      %v438 = vunpack.c.l.b16 %v363
      %v439 = vunpack.c.l.b16 %v364
      %v440 = vunpack.c.l.b16 %v366
      %v441 = vunpack.c.l.b16 %v367
      %v442 = vunpack.c.l.b16 %v369
      %v443 = vunpack.c.l.b16 %v370
      %v444 = vpack.c.b16 %v429, %v428
      %v445 = vpack.c.b16 %v431, %v430
      %v446 = vpack.c.b16 %v433, %v432
      %v447 = vpack.c.b16 %v435, %v434
      %v448 = vpack.c.b16 %v437, %v436
      %v449 = vpack.c.b16 %v439, %v438
      %v450 = vpack.c.b16 %v441, %v440
      %v451 = vpack.c.b16 %v443, %v442
      %v453 = vsel %vm378, %v444, 0
      %v456 = vsel %vm378, %v445, 0
      %v459 = vsel %vm378, %v446, 0
      %v462 = vsel %vm378, %v447, 0
      %v465 = vsel %vm378, %v448, 0
      %v468 = vsel %vm378, %v449, 0
      %v471 = vsel %vm378, %v450, 0
      %v474 = vsel %vm378, %v451, 0
      %vm476 = vcmask 1043456
      %v478 = vsel %vm476, %v411, 0
      %480 = vmatprep.subr.bf16.mxu0 0
      %481 = vmatpush1.bf16.msra.mxu0 %v478
      %482 = vmatprep.subr.bf16.mxu0 0
      %483 = vmatpush1.bf16.msra.mxu0 0
      %484 = vmatprep.subr.bf16.mxu0 0
      %485 = vmatpush1.bf16.msra.mxu0 0
      %486 = vmatprep.subr.bf16.mxu0 0
      %487 = vmatpush1.bf16.msra.mxu0 0
      %488 = vmatprep.subr.bf16.mxu0 0
      %489 = vmatpush1.bf16.msra.mxu0 0
      %490 = vmatprep.subr.bf16.mxu0 0
      %491 = vmatpush1.bf16.msra.mxu0 0
      %492 = vmatprep.subr.bf16.mxu0 0
      %493 = vmatpush1.bf16.msra.mxu0 0
      %494 = vmatprep.subr.bf16.mxu0 0
      %495 = vmatpush1.bf16.msra.mxu0 0
      %496 = vmatprep.subr.bf16.mxu0 0
      %497 = vmatpush1.bf16.msra.mxu0 0
      %498 = vmatprep.subr.bf16.mxu0 0
      %499 = vmatpush1.bf16.msra.mxu0 0
      %500 = vmatprep.subr.bf16.mxu0 0
      %501 = vmatpush1.bf16.msra.mxu0 0
      %502 = vmatprep.subr.bf16.mxu0 0
      %503 = vmatpush1.bf16.msra.mxu0 0
      %504 = vmatprep.subr.bf16.mxu0 0
      %505 = vmatpush1.bf16.msra.mxu0 0
      %506 = vmatprep.subr.bf16.mxu0 0
      %507 = vmatpush1.bf16.msra.mxu0 0
      %508 = vmatprep.subr.bf16.mxu0 0
      %509 = vmatpush1.bf16.msra.mxu0 0
      %510 = vmatprep.subr.bf16.mxu0 0
      %511 = vmatpush1.bf16.msra.mxu0 0
      %512 = vmatprep.mubr.bf16.mxu0 0
      %513 = vmatmul.mubr.bf16.gmra.mrb[0].mxu0 %v453
      %v514 = vpop.f32.mrb[0].mxu0
      %v515 = vadd.f32 0.0, %v514
      %v516 = vpop.f32.mrb[0].mxu0
      %v517 = vpop.f32.mrb[0].mxu0
      %v518 = vadd.f32 0.0, %v517
      %v519 = vpop.f32.mrb[0].mxu0
      %520 = vmatprep.mubr.bf16.mxu0 0
      %521 = vmatmul.mubr.bf16.gmra.mrb[0].mxu0 %v456
      %v522 = vpop.f32.mrb[0].mxu0
      %v523 = vadd.f32 0.0, %v522
      %v524 = vpop.f32.mrb[0].mxu0
      %v525 = vpop.f32.mrb[0].mxu0
      %v526 = vadd.f32 0.0, %v525
      %v527 = vpop.f32.mrb[0].mxu0
      %528 = vmatprep.mubr.bf16.mxu0 0
      %529 = vmatmul.mubr.bf16.gmra.mrb[0].mxu0 %v459
      %v530 = vpop.f32.mrb[0].mxu0
      %v531 = vadd.f32 0.0, %v530
      %v532 = vpop.f32.mrb[0].mxu0
      %v533 = vpop.f32.mrb[0].mxu0
      %v534 = vadd.f32 0.0, %v533
      %v535 = vpop.f32.mrb[0].mxu0
      %536 = vmatprep.mubr.bf16.mxu0 0
      %537 = vmatmul.mubr.bf16.gmra.mrb[0].mxu0 %v462
      %v538 = vpop.f32.mrb[0].mxu0
      %v539 = vadd.f32 0.0, %v538
      %v540 = vpop.f32.mrb[0].mxu0
      %v541 = vpop.f32.mrb[0].mxu0
      %v542 = vadd.f32 0.0, %v541
      %v543 = vpop.f32.mrb[0].mxu0
      %544 = vmatprep.mubr.bf16.mxu0 0
      %545 = vmatmul.mubr.bf16.gmra.mrb[0].mxu0 %v465
      %v546 = vpop.f32.mrb[0].mxu0
      %v547 = vadd.f32 0.0, %v546
      %v548 = vpop.f32.mrb[0].mxu0
      %v549 = vpop.f32.mrb[0].mxu0
      %v550 = vadd.f32 0.0, %v549
      %v551 = vpop.f32.mrb[0].mxu0
      %552 = vmatprep.mubr.bf16.mxu0 0
      %553 = vmatmul.mubr.bf16.gmra.mrb[0].mxu0 %v468
      %v554 = vpop.f32.mrb[0].mxu0
      %v555 = vadd.f32 0.0, %v554
      %v556 = vpop.f32.mrb[0].mxu0
      %v557 = vpop.f32.mrb[0].mxu0
      %v558 = vadd.f32 0.0, %v557
      %v559 = vpop.f32.mrb[0].mxu0
      %560 = vmatprep.mubr.bf16.mxu0 0
      %561 = vmatmul.mubr.bf16.gmra.mrb[0].mxu0 %v471
      %v562 = vpop.f32.mrb[0].mxu0
      %v563 = vadd.f32 0.0, %v562
      %v564 = vpop.f32.mrb[0].mxu0
      %v565 = vpop.f32.mrb[0].mxu0
      %v566 = vadd.f32 0.0, %v565
      %v567 = vpop.f32.mrb[0].mxu0
      %568 = vmatprep.mubr.bf16.mxu0 0
      %569 = vmatmul.mubr.bf16.gmra.mrb[0].mxu0 %v474
      %v570 = vpop.f32.mrb[0].mxu0
      %v571 = vadd.f32 0.0, %v570
      %v572 = vpop.f32.mrb[0].mxu0
      %v573 = vpop.f32.mrb[0].mxu0
      %v574 = vadd.f32 0.0, %v573
      %v575 = vpop.f32.mrb[0].mxu0
      %576 = vdwg.mxu0
      %v577 = vadd.f32 %v395, %v515
      %v578 = vadd.f32 %v396, %v518
      %v579 = vadd.f32 %v397, %v523
      %v580 = vadd.f32 %v398, %v526
      %v581 = vadd.f32 %v399, %v531
      %v582 = vadd.f32 %v400, %v534
      %v583 = vadd.f32 %v401, %v539
      %v584 = vadd.f32 %v402, %v542
      %v585 = vadd.f32 %v403, %v547
      %v586 = vadd.f32 %v404, %v550
      %v587 = vadd.f32 %v405, %v555
      %v588 = vadd.f32 %v406, %v558
      %v589 = vadd.f32 %v407, %v563
      %v590 = vadd.f32 %v408, %v566
      %v591 = vadd.f32 %v409, %v571
      %v592 = vadd.f32 %v410, %v574
      %593 = vst.msk [vmem:[#allocation2] sm:$0xff] %vm378, %v577
      %594 = vst.msk [vmem:[#allocation2 + $0x8] sm:$0xff] %vm378, %v578
      %595 = vst.msk [vmem:[#allocation2 + $0x10] sm:$0xff] %vm378, %v579
      %596 = vst.msk [vmem:[#allocation2 + $0x18] sm:$0xff] %vm378, %v580
      %597 = vst.msk [vmem:[#allocation2 + $0x20] sm:$0xff] %vm378, %v581
      %598 = vst.msk [vmem:[#allocation2 + $0x28] sm:$0xff] %vm378, %v582
      %599 = vst.msk [vmem:[#allocation2 + $0x30] sm:$0xff] %vm378, %v583
      %600 = vst.msk [vmem:[#allocation2 + $0x38] sm:$0xff] %vm378, %v584
      %601 = vst.msk [vmem:[#allocation2 + $0x40] sm:$0xff] %vm378, %v585
      %602 = vst.msk [vmem:[#allocation2 + $0x48] sm:$0xff] %vm378, %v586
      %603 = vst.msk [vmem:[#allocation2 + $0x50] sm:$0xff] %vm378, %v587
      %604 = vst.msk [vmem:[#allocation2 + $0x58] sm:$0xff] %vm378, %v588
      %605 = vst.msk [vmem:[#allocation2 + $0x60] sm:$0xff] %vm378, %v589
      %606 = vst.msk [vmem:[#allocation2 + $0x68] sm:$0xff] %vm378, %v590
      %607 = vst.msk [vmem:[#allocation2 + $0x70] sm:$0xff] %vm378, %v591
      %608 = vst.msk [vmem:[#allocation2 + $0x78] sm:$0xff] %vm378, %v592
      %v609 = vld [vmem:[#allocation2] sm:$0xff]
      %v610 = vld [vmem:[#allocation2 + $0x8] sm:$0xff]
      %v611 = vld [vmem:[#allocation2 + $0x10] sm:$0xff]
      %v612 = vld [vmem:[#allocation2 + $0x18] sm:$0xff]
      %v613 = vld [vmem:[#allocation2 + $0x20] sm:$0xff]
      %v614 = vld [vmem:[#allocation2 + $0x28] sm:$0xff]
      %v615 = vld [vmem:[#allocation2 + $0x30] sm:$0xff]
      %v616 = vld [vmem:[#allocation2 + $0x38] sm:$0xff]
      %v617 = vld [vmem:[#allocation2 + $0x40] sm:$0xff]
      %v618 = vld [vmem:[#allocation2 + $0x48] sm:$0xff]
      %v619 = vld [vmem:[#allocation2 + $0x50] sm:$0xff]
      %v620 = vld [vmem:[#allocation2 + $0x58] sm:$0xff]
      %v621 = vld [vmem:[#allocation2 + $0x60] sm:$0xff]
      %v622 = vld [vmem:[#allocation2 + $0x68] sm:$0xff]
      %v623 = vld [vmem:[#allocation2 + $0x70] sm:$0xff]
      %v624 = vld [vmem:[#allocation2 + $0x78] sm:$0xff]
      %s625 = scalar_lea.vmem %s2, 4
      %v626 = vld [vmem:[%s625] sm:$0xf]
      %vm627 = vsmask.f32 3328
      %vm628 = vsmask.f32 7440
      %vm629 = vmor %vm627, %vm628
      %v631 = vshrl.u32 %v348, 16
      %v633 = vrot.slane %v631, 4
      %v634 = vshll.u32 %v348, 16
      %v636 = vrot.slane %v634, 5
      %v637 = vor.u32 %v633, %v636
      %v638 = vrot.slane %v637, 4
      %v640 = vshll.u32 %v349, 16
      %v642 = vrot.slane %v640, 5
      %v643 = vsel %vm629, %v638, %v642
      %v644 = vshrl.u32 %v349, 16
      %v646 = vrot.slane %v644, 4
      %v647 = vor.u32 %v646, %v642
      %v648 = vrot.slane %v647, 4
      %v650 = vshll.u32 %v350, 16
      %v652 = vrot.slane %v650, 5
      %v653 = vsel %vm629, %v648, %v652
      %v655 = vshrl.u32 %v351, 16
      %v657 = vrot.slane %v655, 4
      %v658 = vshll.u32 %v351, 16
      %v660 = vrot.slane %v658, 5
      %v661 = vor.u32 %v657, %v660
      %v662 = vrot.slane %v661, 4
      %v664 = vshll.u32 %v352, 16
      %v666 = vrot.slane %v664, 5
      %v667 = vsel %vm629, %v662, %v666
      %v668 = vshrl.u32 %v352, 16
      %v670 = vrot.slane %v668, 4
      %v671 = vor.u32 %v670, %v666
      %v672 = vrot.slane %v671, 4
      %v674 = vshll.u32 %v353, 16
      %v676 = vrot.slane %v674, 5
      %v677 = vsel %vm629, %v672, %v676
      %v679 = vshrl.u32 %v354, 16
      %v681 = vrot.slane %v679, 4
      %v682 = vshll.u32 %v354, 16
      %v684 = vrot.slane %v682, 5
      %v685 = vor.u32 %v681, %v684
      %v686 = vrot.slane %v685, 4
      %v688 = vshll.u32 %v355, 16
      %v690 = vrot.slane %v688, 5
      %v691 = vsel %vm629, %v686, %v690
      %v692 = vshrl.u32 %v355, 16
      %v694 = vrot.slane %v692, 4
      %v695 = vor.u32 %v694, %v690
      %v696 = vrot.slane %v695, 4
      %v698 = vshll.u32 %v356, 16
      %v700 = vrot.slane %v698, 5
      %v701 = vsel %vm629, %v696, %v700
      %v703 = vshrl.u32 %v357, 16
      %v705 = vrot.slane %v703, 4
      %v706 = vshll.u32 %v357, 16
      %v708 = vrot.slane %v706, 5
      %v709 = vor.u32 %v705, %v708
      %v710 = vrot.slane %v709, 4
      %v712 = vshll.u32 %v358, 16
      %v714 = vrot.slane %v712, 5
      %v715 = vsel %vm629, %v710, %v714
      %v716 = vshrl.u32 %v358, 16
      %v718 = vrot.slane %v716, 4
      %v719 = vor.u32 %v718, %v714
      %v720 = vrot.slane %v719, 4
      %v722 = vshll.u32 %v359, 16
      %v724 = vrot.slane %v722, 5
      %v725 = vsel %vm629, %v720, %v724
      %v727 = vshrl.u32 %v360, 16
      %v729 = vrot.slane %v727, 4
      %v730 = vshll.u32 %v360, 16
      %v732 = vrot.slane %v730, 5
      %v733 = vor.u32 %v729, %v732
      %v734 = vrot.slane %v733, 4
      %v736 = vshll.u32 %v361, 16
      %v738 = vrot.slane %v736, 5
      %v739 = vsel %vm629, %v734, %v738
      %v740 = vshrl.u32 %v361, 16
      %v742 = vrot.slane %v740, 4
      %v743 = vor.u32 %v742, %v738
      %v744 = vrot.slane %v743, 4
      %v746 = vshll.u32 %v362, 16
      %v748 = vrot.slane %v746, 5
      %v749 = vsel %vm629, %v744, %v748
      %v751 = vshrl.u32 %v363, 16
      %v753 = vrot.slane %v751, 4
      %v754 = vshll.u32 %v363, 16
      %v756 = vrot.slane %v754, 5
      %v757 = vor.u32 %v753, %v756
      %v758 = vrot.slane %v757, 4
      %v760 = vshll.u32 %v364, 16
      %v762 = vrot.slane %v760, 5
      %v763 = vsel %vm629, %v758, %v762
      %v764 = vshrl.u32 %v364, 16
      %v766 = vrot.slane %v764, 4
      %v767 = vor.u32 %v766, %v762
      %v768 = vrot.slane %v767, 4
      %v770 = vshll.u32 %v365, 16
      %v772 = vrot.slane %v770, 5
      %v773 = vsel %vm629, %v768, %v772
      %v775 = vshrl.u32 %v366, 16
      %v777 = vrot.slane %v775, 4
      %v778 = vshll.u32 %v366, 16
      %v780 = vrot.slane %v778, 5
      %v781 = vor.u32 %v777, %v780
      %v782 = vrot.slane %v781, 4
      %v784 = vshll.u32 %v367, 16
      %v786 = vrot.slane %v784, 5
      %v787 = vsel %vm629, %v782, %v786
      %v788 = vshrl.u32 %v367, 16
      %v790 = vrot.slane %v788, 4
      %v791 = vor.u32 %v790, %v786
      %v792 = vrot.slane %v791, 4
      %v794 = vshll.u32 %v368, 16
      %v796 = vrot.slane %v794, 5
      %v797 = vsel %vm629, %v792, %v796
      %v799 = vshrl.u32 %v369, 16
      %v801 = vrot.slane %v799, 4
      %v802 = vshll.u32 %v369, 16
      %v804 = vrot.slane %v802, 5
      %v805 = vor.u32 %v801, %v804
      %v806 = vrot.slane %v805, 4
      %v808 = vshll.u32 %v370, 16
      %v810 = vrot.slane %v808, 5
      %v811 = vsel %vm629, %v806, %v810
      %v812 = vshrl.u32 %v370, 16
      %v814 = vrot.slane %v812, 4
      %v815 = vor.u32 %v814, %v810
      %v816 = vrot.slane %v815, 4
      %v818 = vshll.u32 %v371, 16
      %v820 = vrot.slane %v818, 5
      %v821 = vsel %vm629, %v816, %v820
      %v822 = vunpack.c.l.b16 %v643
      %v823 = vunpack.c.l.b16 %v653
      %v824 = vunpack.c.l.b16 %v667
      %v825 = vunpack.c.l.b16 %v677
      %v826 = vunpack.c.l.b16 %v691
      %v827 = vunpack.c.l.b16 %v701
      %v828 = vunpack.c.l.b16 %v715
      %v829 = vunpack.c.l.b16 %v725
      %v830 = vunpack.c.l.b16 %v739
      %v831 = vunpack.c.l.b16 %v749
      %v832 = vunpack.c.l.b16 %v763
      %v833 = vunpack.c.l.b16 %v773
      %v834 = vunpack.c.l.b16 %v787
      %v835 = vunpack.c.l.b16 %v797
      %v836 = vunpack.c.l.b16 %v811
      %v837 = vunpack.c.l.b16 %v821
      %v838 = vpack.c.b16 %v823, %v822
      %v839 = vpack.c.b16 %v825, %v824
      %v840 = vpack.c.b16 %v827, %v826
      %v841 = vpack.c.b16 %v829, %v828
      %v842 = vpack.c.b16 %v831, %v830
      %v843 = vpack.c.b16 %v833, %v832
      %v844 = vpack.c.b16 %v835, %v834
      %v845 = vpack.c.b16 %v837, %v836
      %v847 = vsel %vm378, %v838, 0
      %v850 = vsel %vm378, %v839, 0
      %v853 = vsel %vm378, %v840, 0
      %v856 = vsel %vm378, %v841, 0
      %v859 = vsel %vm378, %v842, 0
      %v862 = vsel %vm378, %v843, 0
      %v865 = vsel %vm378, %v844, 0
      %v868 = vsel %vm378, %v845, 0
      %v871 = vsel %vm476, %v626, 0
      %873 = vmatprep.subr.bf16.mxu0 0
      %874 = vmatpush1.bf16.msra.mxu0 %v871
      %875 = vmatprep.subr.bf16.mxu0 0
      %876 = vmatpush1.bf16.msra.mxu0 0
      %877 = vmatprep.subr.bf16.mxu0 0
      %878 = vmatpush1.bf16.msra.mxu0 0
      %879 = vmatprep.subr.bf16.mxu0 0
      %880 = vmatpush1.bf16.msra.mxu0 0
      %881 = vmatprep.subr.bf16.mxu0 0
      %882 = vmatpush1.bf16.msra.mxu0 0
      %883 = vmatprep.subr.bf16.mxu0 0
      %884 = vmatpush1.bf16.msra.mxu0 0
      %885 = vmatprep.subr.bf16.mxu0 0
      %886 = vmatpush1.bf16.msra.mxu0 0
      %887 = vmatprep.subr.bf16.mxu0 0
      %888 = vmatpush1.bf16.msra.mxu0 0
      %889 = vmatprep.subr.bf16.mxu0 0
      %890 = vmatpush1.bf16.msra.mxu0 0
      %891 = vmatprep.subr.bf16.mxu0 0
      %892 = vmatpush1.bf16.msra.mxu0 0
      %893 = vmatprep.subr.bf16.mxu0 0
      %894 = vmatpush1.bf16.msra.mxu0 0
      %895 = vmatprep.subr.bf16.mxu0 0
      %896 = vmatpush1.bf16.msra.mxu0 0
      %897 = vmatprep.subr.bf16.mxu0 0
      %898 = vmatpush1.bf16.msra.mxu0 0
      %899 = vmatprep.subr.bf16.mxu0 0
      %900 = vmatpush1.bf16.msra.mxu0 0
      %901 = vmatprep.subr.bf16.mxu0 0
      %902 = vmatpush1.bf16.msra.mxu0 0
      %903 = vmatprep.subr.bf16.mxu0 0
      %904 = vmatpush1.bf16.msra.mxu0 0
      %905 = vmatprep.mubr.bf16.mxu0 0
      %906 = vmatmul.mubr.bf16.gmra.mrb[0].mxu0 %v847
      %v907 = vpop.f32.mrb[0].mxu0
      %v908 = vadd.f32 0.0, %v907
      %v909 = vpop.f32.mrb[0].mxu0
      %v910 = vpop.f32.mrb[0].mxu0
      %v911 = vadd.f32 0.0, %v910
      %v912 = vpop.f32.mrb[0].mxu0
      %913 = vmatprep.mubr.bf16.mxu0 0
      %914 = vmatmul.mubr.bf16.gmra.mrb[0].mxu0 %v850
      %v915 = vpop.f32.mrb[0].mxu0
      %v916 = vadd.f32 0.0, %v915
      %v917 = vpop.f32.mrb[0].mxu0
      %v918 = vpop.f32.mrb[0].mxu0
      %v919 = vadd.f32 0.0, %v918
      %v920 = vpop.f32.mrb[0].mxu0
      %921 = vmatprep.mubr.bf16.mxu0 0
      %922 = vmatmul.mubr.bf16.gmra.mrb[0].mxu0 %v853
      %v923 = vpop.f32.mrb[0].mxu0
      %v924 = vadd.f32 0.0, %v923
      %v925 = vpop.f32.mrb[0].mxu0
      %v926 = vpop.f32.mrb[0].mxu0
      %v927 = vadd.f32 0.0, %v926
      %v928 = vpop.f32.mrb[0].mxu0
      %929 = vmatprep.mubr.bf16.mxu0 0
      %930 = vmatmul.mubr.bf16.gmra.mrb[0].mxu0 %v856
      %v931 = vpop.f32.mrb[0].mxu0
      %v932 = vadd.f32 0.0, %v931
      %v933 = vpop.f32.mrb[0].mxu0
      %v934 = vpop.f32.mrb[0].mxu0
      %v935 = vadd.f32 0.0, %v934
      %v936 = vpop.f32.mrb[0].mxu0
      %937 = vmatprep.mubr.bf16.mxu0 0
      %938 = vmatmul.mubr.bf16.gmra.mrb[0].mxu0 %v859
      %v939 = vpop.f32.mrb[0].mxu0
      %v940 = vadd.f32 0.0, %v939
      %v941 = vpop.f32.mrb[0].mxu0
      %v942 = vpop.f32.mrb[0].mxu0
      %v943 = vadd.f32 0.0, %v942
      %v944 = vpop.f32.mrb[0].mxu0
      %945 = vmatprep.mubr.bf16.mxu0 0
      %946 = vmatmul.mubr.bf16.gmra.mrb[0].mxu0 %v862
      %v947 = vpop.f32.mrb[0].mxu0
      %v948 = vadd.f32 0.0, %v947
      %v949 = vpop.f32.mrb[0].mxu0
      %v950 = vpop.f32.mrb[0].mxu0
      %v951 = vadd.f32 0.0, %v950
      %v952 = vpop.f32.mrb[0].mxu0
      %953 = vmatprep.mubr.bf16.mxu0 0
      %954 = vmatmul.mubr.bf16.gmra.mrb[0].mxu0 %v865
      %v955 = vpop.f32.mrb[0].mxu0
      %v956 = vadd.f32 0.0, %v955
      %v957 = vpop.f32.mrb[0].mxu0
      %v958 = vpop.f32.mrb[0].mxu0
      %v959 = vadd.f32 0.0, %v958
      %v960 = vpop.f32.mrb[0].mxu0
      %961 = vmatprep.mubr.bf16.mxu0 0
      %962 = vmatmul.mubr.bf16.gmra.mrb[0].mxu0 %v868
      %v963 = vpop.f32.mrb[0].mxu0
      %v964 = vadd.f32 0.0, %v963
      %v965 = vpop.f32.mrb[0].mxu0
      %v966 = vpop.f32.mrb[0].mxu0
      %v967 = vadd.f32 0.0, %v966
      %v968 = vpop.f32.mrb[0].mxu0
      %969 = vdwg.mxu0
      %v970 = vadd.f32 %v609, %v908
      %v971 = vadd.f32 %v610, %v911
      %v972 = vadd.f32 %v611, %v916
      %v973 = vadd.f32 %v612, %v919
      %v974 = vadd.f32 %v613, %v924
      %v975 = vadd.f32 %v614, %v927
      %v976 = vadd.f32 %v615, %v932
      %v977 = vadd.f32 %v616, %v935
      %v978 = vadd.f32 %v617, %v940
      %v979 = vadd.f32 %v618, %v943
      %v980 = vadd.f32 %v619, %v948
      %v981 = vadd.f32 %v620, %v951
      %v982 = vadd.f32 %v621, %v956
      %v983 = vadd.f32 %v622, %v959
      %v984 = vadd.f32 %v623, %v964
      %v985 = vadd.f32 %v624, %v967
      %986 = vst.msk [vmem:[#allocation2] sm:$0xff] %vm378, %v970
      %987 = vst.msk [vmem:[#allocation2 + $0x8] sm:$0xff] %vm378, %v971
      %988 = vst.msk [vmem:[#allocation2 + $0x10] sm:$0xff] %vm378, %v972
      %989 = vst.msk [vmem:[#allocation2 + $0x18] sm:$0xff] %vm378, %v973
      %990 = vst.msk [vmem:[#allocation2 + $0x20] sm:$0xff] %vm378, %v974
      %991 = vst.msk [vmem:[#allocation2 + $0x28] sm:$0xff] %vm378, %v975
      %992 = vst.msk [vmem:[#allocation2 + $0x30] sm:$0xff] %vm378, %v976
      %993 = vst.msk [vmem:[#allocation2 + $0x38] sm:$0xff] %vm378, %v977
      %994 = vst.msk [vmem:[#allocation2 + $0x40] sm:$0xff] %vm378, %v978
      %995 = vst.msk [vmem:[#allocation2 + $0x48] sm:$0xff] %vm378, %v979
      %996 = vst.msk [vmem:[#allocation2 + $0x50] sm:$0xff] %vm378, %v980
      %997 = vst.msk [vmem:[#allocation2 + $0x58] sm:$0xff] %vm378, %v981
      %998 = vst.msk [vmem:[#allocation2 + $0x60] sm:$0xff] %vm378, %v982
      %999 = vst.msk [vmem:[#allocation2 + $0x68] sm:$0xff] %vm378, %v983
      %1000 = vst.msk [vmem:[#allocation2 + $0x70] sm:$0xff] %vm378, %v984
      %1001 = vst.msk [vmem:[#allocation2 + $0x78] sm:$0xff] %vm378, %v985
      %v1002 = vld [vmem:[#allocation2] sm:$0xff]
      %v1003 = vld [vmem:[#allocation2 + $0x8] sm:$0xff]
      %v1004 = vld [vmem:[#allocation2 + $0x10] sm:$0xff]
      %v1005 = vld [vmem:[#allocation2 + $0x18] sm:$0xff]
      %v1006 = vld [vmem:[#allocation2 + $0x20] sm:$0xff]
      %v1007 = vld [vmem:[#allocation2 + $0x28] sm:$0xff]
      %v1008 = vld [vmem:[#allocation2 + $0x30] sm:$0xff]
      %v1009 = vld [vmem:[#allocation2 + $0x38] sm:$0xff]
      %v1010 = vld [vmem:[#allocation2 + $0x40] sm:$0xff]
      %v1011 = vld [vmem:[#allocation2 + $0x48] sm:$0xff]
      %v1012 = vld [vmem:[#allocation2 + $0x50] sm:$0xff]
      %v1013 = vld [vmem:[#allocation2 + $0x58] sm:$0xff]
      %v1014 = vld [vmem:[#allocation2 + $0x60] sm:$0xff]
      %v1015 = vld [vmem:[#allocation2 + $0x68] sm:$0xff]
      %v1016 = vld [vmem:[#allocation2 + $0x70] sm:$0xff]
      %v1017 = vld [vmem:[#allocation2 + $0x78] sm:$0xff]
      %s1018 = scalar_lea.vmem %s2, 8
      %v1019 = vld [vmem:[%s1018] sm:$0xf]
      %vm1028 = vcmask 1042432
      %vm1029 = vcmask 1046532
      %vm1030 = vmor %vm1028, %vm1029
      %v1031 = vrot.slane %v348, 5
      %v1032 = vrot.slane %v1031, 4
      %v1033 = vrot.slane %v349, 5
      %v1034 = vsel %vm1030, %v1032, %v1033
      %v1035 = vrot.slane %v1033, 4
      %v1036 = vrot.slane %v350, 5
      %v1037 = vsel %vm1030, %v1035, %v1036
      %v1038 = vrot.slane %v351, 5
      %v1039 = vrot.slane %v1038, 4
      %v1040 = vrot.slane %v352, 5
      %v1041 = vsel %vm1030, %v1039, %v1040
      %v1042 = vrot.slane %v1040, 4
      %v1043 = vrot.slane %v353, 5
      %v1044 = vsel %vm1030, %v1042, %v1043
      %v1045 = vrot.slane %v354, 5
      %v1046 = vrot.slane %v1045, 4
      %v1047 = vrot.slane %v355, 5
      %v1048 = vsel %vm1030, %v1046, %v1047
      %v1049 = vrot.slane %v1047, 4
      %v1050 = vrot.slane %v356, 5
      %v1051 = vsel %vm1030, %v1049, %v1050
      %v1052 = vrot.slane %v357, 5
      %v1053 = vrot.slane %v1052, 4
      %v1054 = vrot.slane %v358, 5
      %v1055 = vsel %vm1030, %v1053, %v1054
      %v1056 = vrot.slane %v1054, 4
      %v1057 = vrot.slane %v359, 5
      %v1058 = vsel %vm1030, %v1056, %v1057
      %v1059 = vrot.slane %v360, 5
      %v1060 = vrot.slane %v1059, 4
      %v1061 = vrot.slane %v361, 5
      %v1062 = vsel %vm1030, %v1060, %v1061
      %v1063 = vrot.slane %v1061, 4
      %v1064 = vrot.slane %v362, 5
      %v1065 = vsel %vm1030, %v1063, %v1064
      %v1066 = vrot.slane %v363, 5
      %v1067 = vrot.slane %v1066, 4
      %v1068 = vrot.slane %v364, 5
      %v1069 = vsel %vm1030, %v1067, %v1068
      %v1070 = vrot.slane %v1068, 4
      %v1071 = vrot.slane %v365, 5
      %v1072 = vsel %vm1030, %v1070, %v1071
      %v1073 = vrot.slane %v366, 5
      %v1074 = vrot.slane %v1073, 4
      %v1075 = vrot.slane %v367, 5
      %v1076 = vsel %vm1030, %v1074, %v1075
      %v1077 = vrot.slane %v1075, 4
      %v1078 = vrot.slane %v368, 5
      %v1079 = vsel %vm1030, %v1077, %v1078
      %v1080 = vrot.slane %v369, 5
      %v1081 = vrot.slane %v1080, 4
      %v1082 = vrot.slane %v370, 5
      %v1083 = vsel %vm1030, %v1081, %v1082
      %v1084 = vrot.slane %v1082, 4
      %v1085 = vrot.slane %v371, 5
      %v1086 = vsel %vm1030, %v1084, %v1085
      %v1087 = vunpack.c.l.b16 %v1034
      %v1088 = vunpack.c.l.b16 %v1037
      %v1089 = vunpack.c.l.b16 %v1041
      %v1090 = vunpack.c.l.b16 %v1044
      %v1091 = vunpack.c.l.b16 %v1048
      %v1092 = vunpack.c.l.b16 %v1051
      %v1093 = vunpack.c.l.b16 %v1055
      %v1094 = vunpack.c.l.b16 %v1058
      %v1095 = vunpack.c.l.b16 %v1062
      %v1096 = vunpack.c.l.b16 %v1065
      %v1097 = vunpack.c.l.b16 %v1069
      %v1098 = vunpack.c.l.b16 %v1072
      %v1099 = vunpack.c.l.b16 %v1076
      %v1100 = vunpack.c.l.b16 %v1079
      %v1101 = vunpack.c.l.b16 %v1083
      %v1102 = vunpack.c.l.b16 %v1086
      %v1103 = vpack.c.b16 %v1088, %v1087
      %v1104 = vpack.c.b16 %v1090, %v1089
      %v1105 = vpack.c.b16 %v1092, %v1091
      %v1106 = vpack.c.b16 %v1094, %v1093
      %v1107 = vpack.c.b16 %v1096, %v1095
      %v1108 = vpack.c.b16 %v1098, %v1097
      %v1109 = vpack.c.b16 %v1100, %v1099
      %v1110 = vpack.c.b16 %v1102, %v1101
      %v1112 = vsel %vm378, %v1103, 0
      %v1115 = vsel %vm378, %v1104, 0
      %v1118 = vsel %vm378, %v1105, 0
      %v1121 = vsel %vm378, %v1106, 0
      %v1124 = vsel %vm378, %v1107, 0
      %v1127 = vsel %vm378, %v1108, 0
      %v1130 = vsel %vm378, %v1109, 0
      %v1133 = vsel %vm378, %v1110, 0
      %v1136 = vsel %vm476, %v1019, 0
      %1138 = vmatprep.subr.bf16.mxu0 0
      %1139 = vmatpush1.bf16.msra.mxu0 %v1136
      %1140 = vmatprep.subr.bf16.mxu0 0
      %1141 = vmatpush1.bf16.msra.mxu0 0
      %1142 = vmatprep.subr.bf16.mxu0 0
      %1143 = vmatpush1.bf16.msra.mxu0 0
      %1144 = vmatprep.subr.bf16.mxu0 0
      %1145 = vmatpush1.bf16.msra.mxu0 0
      %1146 = vmatprep.subr.bf16.mxu0 0
      %1147 = vmatpush1.bf16.msra.mxu0 0
      %1148 = vmatprep.subr.bf16.mxu0 0
      %1149 = vmatpush1.bf16.msra.mxu0 0
      %1150 = vmatprep.subr.bf16.mxu0 0
      %1151 = vmatpush1.bf16.msra.mxu0 0
      %1152 = vmatprep.subr.bf16.mxu0 0
      %1153 = vmatpush1.bf16.msra.mxu0 0
      %1154 = vmatprep.subr.bf16.mxu0 0
      %1155 = vmatpush1.bf16.msra.mxu0 0
      %1156 = vmatprep.subr.bf16.mxu0 0
      %1157 = vmatpush1.bf16.msra.mxu0 0
      %1158 = vmatprep.subr.bf16.mxu0 0
      %1159 = vmatpush1.bf16.msra.mxu0 0
      %1160 = vmatprep.subr.bf16.mxu0 0
      %1161 = vmatpush1.bf16.msra.mxu0 0
      %1162 = vmatprep.subr.bf16.mxu0 0
      %1163 = vmatpush1.bf16.msra.mxu0 0
      %1164 = vmatprep.subr.bf16.mxu0 0
      %1165 = vmatpush1.bf16.msra.mxu0 0
      %1166 = vmatprep.subr.bf16.mxu0 0
      %1167 = vmatpush1.bf16.msra.mxu0 0
      %1168 = vmatprep.subr.bf16.mxu0 0
      %1169 = vmatpush1.bf16.msra.mxu0 0
      %1170 = vmatprep.mubr.bf16.mxu0 0
      %1171 = vmatmul.mubr.bf16.gmra.mrb[0].mxu0 %v1112
      %v1172 = vpop.f32.mrb[0].mxu0
      %v1173 = vadd.f32 0.0, %v1172
      %v1174 = vpop.f32.mrb[0].mxu0
      %v1175 = vpop.f32.mrb[0].mxu0
      %v1176 = vadd.f32 0.0, %v1175
      %v1177 = vpop.f32.mrb[0].mxu0
      %1178 = vmatprep.mubr.bf16.mxu0 0
      %1179 = vmatmul.mubr.bf16.gmra.mrb[0].mxu0 %v1115
      %v1180 = vpop.f32.mrb[0].mxu0
      %v1181 = vadd.f32 0.0, %v1180
      %v1182 = vpop.f32.mrb[0].mxu0
      %v1183 = vpop.f32.mrb[0].mxu0
      %v1184 = vadd.f32 0.0, %v1183
      %v1185 = vpop.f32.mrb[0].mxu0
      %1186 = vmatprep.mubr.bf16.mxu0 0
      %1187 = vmatmul.mubr.bf16.gmra.mrb[0].mxu0 %v1118
      %v1188 = vpop.f32.mrb[0].mxu0
      %v1189 = vadd.f32 0.0, %v1188
      %v1190 = vpop.f32.mrb[0].mxu0
      %v1191 = vpop.f32.mrb[0].mxu0
      %v1192 = vadd.f32 0.0, %v1191
      %v1193 = vpop.f32.mrb[0].mxu0
      %1194 = vmatprep.mubr.bf16.mxu0 0
      %1195 = vmatmul.mubr.bf16.gmra.mrb[0].mxu0 %v1121
      %v1196 = vpop.f32.mrb[0].mxu0
      %v1197 = vadd.f32 0.0, %v1196
      %v1198 = vpop.f32.mrb[0].mxu0
      %v1199 = vpop.f32.mrb[0].mxu0
      %v1200 = vadd.f32 0.0, %v1199
      %v1201 = vpop.f32.mrb[0].mxu0
      %1202 = vmatprep.mubr.bf16.mxu0 0
      %1203 = vmatmul.mubr.bf16.gmra.mrb[0].mxu0 %v1124
      %v1204 = vpop.f32.mrb[0].mxu0
      %v1205 = vadd.f32 0.0, %v1204
      %v1206 = vpop.f32.mrb[0].mxu0
      %v1207 = vpop.f32.mrb[0].mxu0
      %v1208 = vadd.f32 0.0, %v1207
      %v1209 = vpop.f32.mrb[0].mxu0
      %1210 = vmatprep.mubr.bf16.mxu0 0
      %1211 = vmatmul.mubr.bf16.gmra.mrb[0].mxu0 %v1127
      %v1212 = vpop.f32.mrb[0].mxu0
      %v1213 = vadd.f32 0.0, %v1212
      %v1214 = vpop.f32.mrb[0].mxu0
      %v1215 = vpop.f32.mrb[0].mxu0
      %v1216 = vadd.f32 0.0, %v1215
      %v1217 = vpop.f32.mrb[0].mxu0
      %1218 = vmatprep.mubr.bf16.mxu0 0
      %1219 = vmatmul.mubr.bf16.gmra.mrb[0].mxu0 %v1130
      %v1220 = vpop.f32.mrb[0].mxu0
      %v1221 = vadd.f32 0.0, %v1220
      %v1222 = vpop.f32.mrb[0].mxu0
      %v1223 = vpop.f32.mrb[0].mxu0
      %v1224 = vadd.f32 0.0, %v1223
      %v1225 = vpop.f32.mrb[0].mxu0
      %1226 = vmatprep.mubr.bf16.mxu0 0
      %1227 = vmatmul.mubr.bf16.gmra.mrb[0].mxu0 %v1133
      %v1228 = vpop.f32.mrb[0].mxu0
      %v1229 = vadd.f32 0.0, %v1228
      %v1230 = vpop.f32.mrb[0].mxu0
      %v1231 = vpop.f32.mrb[0].mxu0
      %v1232 = vadd.f32 0.0, %v1231
      %v1233 = vpop.f32.mrb[0].mxu0
      %1234 = vdwg.mxu0
      %v1235 = vadd.f32 %v1002, %v1173
      %v1236 = vadd.f32 %v1003, %v1176
      %v1237 = vadd.f32 %v1004, %v1181
      %v1238 = vadd.f32 %v1005, %v1184
      %v1239 = vadd.f32 %v1006, %v1189
      %v1240 = vadd.f32 %v1007, %v1192
      %v1241 = vadd.f32 %v1008, %v1197
      %v1242 = vadd.f32 %v1009, %v1200
      %v1243 = vadd.f32 %v1010, %v1205
      %v1244 = vadd.f32 %v1011, %v1208
      %v1245 = vadd.f32 %v1012, %v1213
      %v1246 = vadd.f32 %v1013, %v1216
      %v1247 = vadd.f32 %v1014, %v1221
      %v1248 = vadd.f32 %v1015, %v1224
      %v1249 = vadd.f32 %v1016, %v1229
      %v1250 = vadd.f32 %v1017, %v1232
      %1251 = vst.msk [vmem:[#allocation2] sm:$0xff] %vm378, %v1235
      %1252 = vst.msk [vmem:[#allocation2 + $0x8] sm:$0xff] %vm378, %v1236
      %1253 = vst.msk [vmem:[#allocation2 + $0x10] sm:$0xff] %vm378, %v1237
      %1254 = vst.msk [vmem:[#allocation2 + $0x18] sm:$0xff] %vm378, %v1238
      %1255 = vst.msk [vmem:[#allocation2 + $0x20] sm:$0xff] %vm378, %v1239
      %1256 = vst.msk [vmem:[#allocation2 + $0x28] sm:$0xff] %vm378, %v1240
      %1257 = vst.msk [vmem:[#allocation2 + $0x30] sm:$0xff] %vm378, %v1241
      %1258 = vst.msk [vmem:[#allocation2 + $0x38] sm:$0xff] %vm378, %v1242
      %1259 = vst.msk [vmem:[#allocation2 + $0x40] sm:$0xff] %vm378, %v1243
      %1260 = vst.msk [vmem:[#allocation2 + $0x48] sm:$0xff] %vm378, %v1244
      %1261 = vst.msk [vmem:[#allocation2 + $0x50] sm:$0xff] %vm378, %v1245
      %1262 = vst.msk [vmem:[#allocation2 + $0x58] sm:$0xff] %vm378, %v1246
      %1263 = vst.msk [vmem:[#allocation2 + $0x60] sm:$0xff] %vm378, %v1247
      %1264 = vst.msk [vmem:[#allocation2 + $0x68] sm:$0xff] %vm378, %v1248
      %1265 = vst.msk [vmem:[#allocation2 + $0x70] sm:$0xff] %vm378, %v1249
      %1266 = vst.msk [vmem:[#allocation2 + $0x78] sm:$0xff] %vm378, %v1250
      %v1267 = vld [vmem:[#allocation2] sm:$0xff]
      %v1268 = vld [vmem:[#allocation2 + $0x8] sm:$0xff]
      %v1269 = vld [vmem:[#allocation2 + $0x10] sm:$0xff]
      %v1270 = vld [vmem:[#allocation2 + $0x18] sm:$0xff]
      %v1271 = vld [vmem:[#allocation2 + $0x20] sm:$0xff]
      %v1272 = vld [vmem:[#allocation2 + $0x28] sm:$0xff]
      %v1273 = vld [vmem:[#allocation2 + $0x30] sm:$0xff]
      %v1274 = vld [vmem:[#allocation2 + $0x38] sm:$0xff]
      %v1275 = vld [vmem:[#allocation2 + $0x40] sm:$0xff]
      %v1276 = vld [vmem:[#allocation2 + $0x48] sm:$0xff]
      %v1277 = vld [vmem:[#allocation2 + $0x50] sm:$0xff]
      %v1278 = vld [vmem:[#allocation2 + $0x58] sm:$0xff]
      %v1279 = vld [vmem:[#allocation2 + $0x60] sm:$0xff]
      %v1280 = vld [vmem:[#allocation2 + $0x68] sm:$0xff]
      %v1281 = vld [vmem:[#allocation2 + $0x70] sm:$0xff]
      %v1282 = vld [vmem:[#allocation2 + $0x78] sm:$0xff]
      %s1283 = scalar_lea.vmem %s2, 12
      %v1284 = vld [vmem:[%s1283] sm:$0xf]
      %v1287 = vunpack.c.l.b16 %v372
      %v1288 = vunpack.c.l.b16 %v373
      %v1289 = vpack.c.b16 %v1288, %v1287
      %v1291 = vsel %vm378, %v1289, 0
      %v1294 = vsel %vm476, %v1284, 0
      %1296 = vmatprep.subr.bf16.mxu0 0
      %1297 = vmatpush1.bf16.msra.mxu0 %v1294
      %1298 = vmatprep.subr.bf16.mxu0 0
      %1299 = vmatpush1.bf16.msra.mxu0 0
      %1300 = vmatprep.subr.bf16.mxu0 0
      %1301 = vmatpush1.bf16.msra.mxu0 0
      %1302 = vmatprep.subr.bf16.mxu0 0
      %1303 = vmatpush1.bf16.msra.mxu0 0
      %1304 = vmatprep.subr.bf16.mxu0 0
      %1305 = vmatpush1.bf16.msra.mxu0 0
      %1306 = vmatprep.subr.bf16.mxu0 0
      %1307 = vmatpush1.bf16.msra.mxu0 0
      %1308 = vmatprep.subr.bf16.mxu0 0
      %1309 = vmatpush1.bf16.msra.mxu0 0
      %1310 = vmatprep.subr.bf16.mxu0 0
      %1311 = vmatpush1.bf16.msra.mxu0 0
      %1312 = vmatprep.subr.bf16.mxu0 0
      %1313 = vmatpush1.bf16.msra.mxu0 0
      %1314 = vmatprep.subr.bf16.mxu0 0
      %1315 = vmatpush1.bf16.msra.mxu0 0
      %1316 = vmatprep.subr.bf16.mxu0 0
      %1317 = vmatpush1.bf16.msra.mxu0 0
      %1318 = vmatprep.subr.bf16.mxu0 0
      %1319 = vmatpush1.bf16.msra.mxu0 0
      %1320 = vmatprep.subr.bf16.mxu0 0
      %1321 = vmatpush1.bf16.msra.mxu0 0
      %1322 = vmatprep.subr.bf16.mxu0 0
      %1323 = vmatpush1.bf16.msra.mxu0 0
      %1324 = vmatprep.subr.bf16.mxu0 0
      %1325 = vmatpush1.bf16.msra.mxu0 0
      %1326 = vmatprep.subr.bf16.mxu0 0
      %1327 = vmatpush1.bf16.msra.mxu0 0
      %1328 = vmatprep.mubr.bf16.mxu0 0
      %1329 = vmatmul.mubr.bf16.gmra.mrb[0].mxu0 %v456
      %v1330 = vpop.f32.mrb[0].mxu0
      %v1331 = vadd.f32 0.0, %v1330
      %v1332 = vpop.f32.mrb[0].mxu0
      %v1333 = vpop.f32.mrb[0].mxu0
      %v1334 = vadd.f32 0.0, %v1333
      %v1335 = vpop.f32.mrb[0].mxu0
      %1336 = vmatprep.mubr.bf16.mxu0 0
      %1337 = vmatmul.mubr.bf16.gmra.mrb[0].mxu0 %v459
      %v1338 = vpop.f32.mrb[0].mxu0
      %v1339 = vadd.f32 0.0, %v1338
      %v1340 = vpop.f32.mrb[0].mxu0
      %v1341 = vpop.f32.mrb[0].mxu0
      %v1342 = vadd.f32 0.0, %v1341
      %v1343 = vpop.f32.mrb[0].mxu0
      %1344 = vmatprep.mubr.bf16.mxu0 0
      %1345 = vmatmul.mubr.bf16.gmra.mrb[0].mxu0 %v462
      %v1346 = vpop.f32.mrb[0].mxu0
      %v1347 = vadd.f32 0.0, %v1346
      %v1348 = vpop.f32.mrb[0].mxu0
      %v1349 = vpop.f32.mrb[0].mxu0
      %v1350 = vadd.f32 0.0, %v1349
      %v1351 = vpop.f32.mrb[0].mxu0
      %1352 = vmatprep.mubr.bf16.mxu0 0
      %1353 = vmatmul.mubr.bf16.gmra.mrb[0].mxu0 %v465
      %v1354 = vpop.f32.mrb[0].mxu0
      %v1355 = vadd.f32 0.0, %v1354
      %v1356 = vpop.f32.mrb[0].mxu0
      %v1357 = vpop.f32.mrb[0].mxu0
      %v1358 = vadd.f32 0.0, %v1357
      %v1359 = vpop.f32.mrb[0].mxu0
      %1360 = vmatprep.mubr.bf16.mxu0 0
      %1361 = vmatmul.mubr.bf16.gmra.mrb[0].mxu0 %v468
      %v1362 = vpop.f32.mrb[0].mxu0
      %v1363 = vadd.f32 0.0, %v1362
      %v1364 = vpop.f32.mrb[0].mxu0
      %v1365 = vpop.f32.mrb[0].mxu0
      %v1366 = vadd.f32 0.0, %v1365
      %v1367 = vpop.f32.mrb[0].mxu0
      %1368 = vmatprep.mubr.bf16.mxu0 0
      %1369 = vmatmul.mubr.bf16.gmra.mrb[0].mxu0 %v471
      %v1370 = vpop.f32.mrb[0].mxu0
      %v1371 = vadd.f32 0.0, %v1370
      %v1372 = vpop.f32.mrb[0].mxu0
      %v1373 = vpop.f32.mrb[0].mxu0
      %v1374 = vadd.f32 0.0, %v1373
      %v1375 = vpop.f32.mrb[0].mxu0
      %1376 = vmatprep.mubr.bf16.mxu0 0
      %1377 = vmatmul.mubr.bf16.gmra.mrb[0].mxu0 %v474
      %v1378 = vpop.f32.mrb[0].mxu0
      %v1379 = vadd.f32 0.0, %v1378
      %v1380 = vpop.f32.mrb[0].mxu0
      %v1381 = vpop.f32.mrb[0].mxu0
      %v1382 = vadd.f32 0.0, %v1381
      %v1383 = vpop.f32.mrb[0].mxu0
      %1384 = vmatprep.mubr.bf16.mxu0 0
      %1385 = vmatmul.mubr.bf16.gmra.mrb[0].mxu0 %v1291
      %v1386 = vpop.f32.mrb[0].mxu0
      %v1387 = vadd.f32 0.0, %v1386
      %v1388 = vpop.f32.mrb[0].mxu0
      %v1389 = vpop.f32.mrb[0].mxu0
      %v1390 = vadd.f32 0.0, %v1389
      %v1391 = vpop.f32.mrb[0].mxu0
      %1392 = vdwg.mxu0
      %v1393 = vadd.f32 %v1267, %v1331
      %v1394 = vadd.f32 %v1268, %v1334
      %v1395 = vadd.f32 %v1269, %v1339
      %v1396 = vadd.f32 %v1270, %v1342
      %v1397 = vadd.f32 %v1271, %v1347
      %v1398 = vadd.f32 %v1272, %v1350
      %v1399 = vadd.f32 %v1273, %v1355
      %v1400 = vadd.f32 %v1274, %v1358
      %v1401 = vadd.f32 %v1275, %v1363
      %v1402 = vadd.f32 %v1276, %v1366
      %v1403 = vadd.f32 %v1277, %v1371
      %v1404 = vadd.f32 %v1278, %v1374
      %v1405 = vadd.f32 %v1279, %v1379
      %v1406 = vadd.f32 %v1280, %v1382
      %v1407 = vadd.f32 %v1281, %v1387
      %v1408 = vadd.f32 %v1282, %v1390
      %1409 = vst.msk [vmem:[#allocation2] sm:$0xff] %vm378, %v1393
      %1410 = vst.msk [vmem:[#allocation2 + $0x8] sm:$0xff] %vm378, %v1394
      %1411 = vst.msk [vmem:[#allocation2 + $0x10] sm:$0xff] %vm378, %v1395
      %1412 = vst.msk [vmem:[#allocation2 + $0x18] sm:$0xff] %vm378, %v1396
      %1413 = vst.msk [vmem:[#allocation2 + $0x20] sm:$0xff] %vm378, %v1397
      %1414 = vst.msk [vmem:[#allocation2 + $0x28] sm:$0xff] %vm378, %v1398
      %1415 = vst.msk [vmem:[#allocation2 + $0x30] sm:$0xff] %vm378, %v1399
      %1416 = vst.msk [vmem:[#allocation2 + $0x38] sm:$0xff] %vm378, %v1400
      %1417 = vst.msk [vmem:[#allocation2 + $0x40] sm:$0xff] %vm378, %v1401
      %1418 = vst.msk [vmem:[#allocation2 + $0x48] sm:$0xff] %vm378, %v1402
      %1419 = vst.msk [vmem:[#allocation2 + $0x50] sm:$0xff] %vm378, %v1403
      %1420 = vst.msk [vmem:[#allocation2 + $0x58] sm:$0xff] %vm378, %v1404
      %1421 = vst.msk [vmem:[#allocation2 + $0x60] sm:$0xff] %vm378, %v1405
      %1422 = vst.msk [vmem:[#allocation2 + $0x68] sm:$0xff] %vm378, %v1406
      %1423 = vst.msk [vmem:[#allocation2 + $0x70] sm:$0xff] %vm378, %v1407
      %1424 = vst.msk [vmem:[#allocation2 + $0x78] sm:$0xff] %vm378, %v1408
      %v1425 = vld [vmem:[#allocation2] sm:$0xff]
      %v1426 = vld [vmem:[#allocation2 + $0x8] sm:$0xff]
      %v1427 = vld [vmem:[#allocation2 + $0x10] sm:$0xff]
      %v1428 = vld [vmem:[#allocation2 + $0x18] sm:$0xff]
      %v1429 = vld [vmem:[#allocation2 + $0x20] sm:$0xff]
      %v1430 = vld [vmem:[#allocation2 + $0x28] sm:$0xff]
      %v1431 = vld [vmem:[#allocation2 + $0x30] sm:$0xff]
      %v1432 = vld [vmem:[#allocation2 + $0x38] sm:$0xff]
      %v1433 = vld [vmem:[#allocation2 + $0x40] sm:$0xff]
      %v1434 = vld [vmem:[#allocation2 + $0x48] sm:$0xff]
      %v1435 = vld [vmem:[#allocation2 + $0x50] sm:$0xff]
      %v1436 = vld [vmem:[#allocation2 + $0x58] sm:$0xff]
      %v1437 = vld [vmem:[#allocation2 + $0x60] sm:$0xff]
      %v1438 = vld [vmem:[#allocation2 + $0x68] sm:$0xff]
      %v1439 = vld [vmem:[#allocation2 + $0x70] sm:$0xff]
      %v1440 = vld [vmem:[#allocation2 + $0x78] sm:$0xff]
      %s1441 = scalar_lea.vmem %s2, 16
      %v1442 = vld [vmem:[%s1441] sm:$0xf]
      %v1444 = vshrl.u32 %v372, 16
      %v1446 = vrot.slane %v1444, 4
      %v1447 = vshll.u32 %v372, 16
      %v1449 = vrot.slane %v1447, 5
      %v1450 = vor.u32 %v1446, %v1449
      %v1451 = vrot.slane %v1450, 4
      %v1453 = vshll.u32 %v373, 16
      %v1455 = vrot.slane %v1453, 5
      %v1456 = vsel %vm629, %v1451, %v1455
      %v1457 = vshrl.u32 %v373, 16
      %v1459 = vrot.slane %v1457, 4
      %v1460 = vor.u32 %v1459, %v1455
      %v1461 = vrot.slane %v1460, 4
      %v1463 = vshll.u32 %v374, 16
      %v1465 = vrot.slane %v1463, 5
      %v1466 = vsel %vm629, %v1461, %v1465
      %v1467 = vunpack.c.l.b16 %v1456
      %v1468 = vunpack.c.l.b16 %v1466
      %v1469 = vpack.c.b16 %v1468, %v1467
      %v1471 = vsel %vm378, %v1469, 0
      %v1474 = vsel %vm476, %v1442, 0
      %1476 = vmatprep.subr.bf16.mxu0 0
      %1477 = vmatpush1.bf16.msra.mxu0 %v1474
      %1478 = vmatprep.subr.bf16.mxu0 0
      %1479 = vmatpush1.bf16.msra.mxu0 0
      %1480 = vmatprep.subr.bf16.mxu0 0
      %1481 = vmatpush1.bf16.msra.mxu0 0
      %1482 = vmatprep.subr.bf16.mxu0 0
      %1483 = vmatpush1.bf16.msra.mxu0 0
      %1484 = vmatprep.subr.bf16.mxu0 0
      %1485 = vmatpush1.bf16.msra.mxu0 0
      %1486 = vmatprep.subr.bf16.mxu0 0
      %1487 = vmatpush1.bf16.msra.mxu0 0
      %1488 = vmatprep.subr.bf16.mxu0 0
      %1489 = vmatpush1.bf16.msra.mxu0 0
      %1490 = vmatprep.subr.bf16.mxu0 0
      %1491 = vmatpush1.bf16.msra.mxu0 0
      %1492 = vmatprep.subr.bf16.mxu0 0
      %1493 = vmatpush1.bf16.msra.mxu0 0
      %1494 = vmatprep.subr.bf16.mxu0 0
      %1495 = vmatpush1.bf16.msra.mxu0 0
      %1496 = vmatprep.subr.bf16.mxu0 0
      %1497 = vmatpush1.bf16.msra.mxu0 0
      %1498 = vmatprep.subr.bf16.mxu0 0
      %1499 = vmatpush1.bf16.msra.mxu0 0
      %1500 = vmatprep.subr.bf16.mxu0 0
      %1501 = vmatpush1.bf16.msra.mxu0 0
      %1502 = vmatprep.subr.bf16.mxu0 0
      %1503 = vmatpush1.bf16.msra.mxu0 0
      %1504 = vmatprep.subr.bf16.mxu0 0
      %1505 = vmatpush1.bf16.msra.mxu0 0
      %1506 = vmatprep.subr.bf16.mxu0 0
      %1507 = vmatpush1.bf16.msra.mxu0 0
      %1508 = vmatprep.mubr.bf16.mxu0 0
      %1509 = vmatmul.mubr.bf16.gmra.mrb[0].mxu0 %v850
      %v1510 = vpop.f32.mrb[0].mxu0
      %v1511 = vadd.f32 0.0, %v1510
      %v1512 = vpop.f32.mrb[0].mxu0
      %v1513 = vpop.f32.mrb[0].mxu0
      %v1514 = vadd.f32 0.0, %v1513
      %v1515 = vpop.f32.mrb[0].mxu0
      %1516 = vmatprep.mubr.bf16.mxu0 0
      %1517 = vmatmul.mubr.bf16.gmra.mrb[0].mxu0 %v853
      %v1518 = vpop.f32.mrb[0].mxu0
      %v1519 = vadd.f32 0.0, %v1518
      %v1520 = vpop.f32.mrb[0].mxu0
      %v1521 = vpop.f32.mrb[0].mxu0
      %v1522 = vadd.f32 0.0, %v1521
      %v1523 = vpop.f32.mrb[0].mxu0
      %1524 = vmatprep.mubr.bf16.mxu0 0
      %1525 = vmatmul.mubr.bf16.gmra.mrb[0].mxu0 %v856
      %v1526 = vpop.f32.mrb[0].mxu0
      %v1527 = vadd.f32 0.0, %v1526
      %v1528 = vpop.f32.mrb[0].mxu0
      %v1529 = vpop.f32.mrb[0].mxu0
      %v1530 = vadd.f32 0.0, %v1529
      %v1531 = vpop.f32.mrb[0].mxu0
      %1532 = vmatprep.mubr.bf16.mxu0 0
      %1533 = vmatmul.mubr.bf16.gmra.mrb[0].mxu0 %v859
      %v1534 = vpop.f32.mrb[0].mxu0
      %v1535 = vadd.f32 0.0, %v1534
      %v1536 = vpop.f32.mrb[0].mxu0
      %v1537 = vpop.f32.mrb[0].mxu0
      %v1538 = vadd.f32 0.0, %v1537
      %v1539 = vpop.f32.mrb[0].mxu0
      %1540 = vmatprep.mubr.bf16.mxu0 0
      %1541 = vmatmul.mubr.bf16.gmra.mrb[0].mxu0 %v862
      %v1542 = vpop.f32.mrb[0].mxu0
      %v1543 = vadd.f32 0.0, %v1542
      %v1544 = vpop.f32.mrb[0].mxu0
      %v1545 = vpop.f32.mrb[0].mxu0
      %v1546 = vadd.f32 0.0, %v1545
      %v1547 = vpop.f32.mrb[0].mxu0
      %1548 = vmatprep.mubr.bf16.mxu0 0
      %1549 = vmatmul.mubr.bf16.gmra.mrb[0].mxu0 %v865
      %v1550 = vpop.f32.mrb[0].mxu0
      %v1551 = vadd.f32 0.0, %v1550
      %v1552 = vpop.f32.mrb[0].mxu0
      %v1553 = vpop.f32.mrb[0].mxu0
      %v1554 = vadd.f32 0.0, %v1553
      %v1555 = vpop.f32.mrb[0].mxu0
      %1556 = vmatprep.mubr.bf16.mxu0 0
      %1557 = vmatmul.mubr.bf16.gmra.mrb[0].mxu0 %v868
      %v1558 = vpop.f32.mrb[0].mxu0
      %v1559 = vadd.f32 0.0, %v1558
      %v1560 = vpop.f32.mrb[0].mxu0
      %v1561 = vpop.f32.mrb[0].mxu0
      %v1562 = vadd.f32 0.0, %v1561
      %v1563 = vpop.f32.mrb[0].mxu0
      %1564 = vmatprep.mubr.bf16.mxu0 0
      %1565 = vmatmul.mubr.bf16.gmra.mrb[0].mxu0 %v1471
      %v1566 = vpop.f32.mrb[0].mxu0
      %v1567 = vadd.f32 0.0, %v1566
      %v1568 = vpop.f32.mrb[0].mxu0
      %v1569 = vpop.f32.mrb[0].mxu0
      %v1570 = vadd.f32 0.0, %v1569
      %v1571 = vpop.f32.mrb[0].mxu0
      %1572 = vdwg.mxu0
      %v1573 = vadd.f32 %v1425, %v1511
      %v1574 = vadd.f32 %v1426, %v1514
      %v1575 = vadd.f32 %v1427, %v1519
      %v1576 = vadd.f32 %v1428, %v1522
      %v1577 = vadd.f32 %v1429, %v1527
      %v1578 = vadd.f32 %v1430, %v1530
      %v1579 = vadd.f32 %v1431, %v1535
      %v1580 = vadd.f32 %v1432, %v1538
      %v1581 = vadd.f32 %v1433, %v1543
      %v1582 = vadd.f32 %v1434, %v1546
      %v1583 = vadd.f32 %v1435, %v1551
      %v1584 = vadd.f32 %v1436, %v1554
      %v1585 = vadd.f32 %v1437, %v1559
      %v1586 = vadd.f32 %v1438, %v1562
      %v1587 = vadd.f32 %v1439, %v1567
      %v1588 = vadd.f32 %v1440, %v1570
      %1589 = vst.msk [vmem:[#allocation2] sm:$0xff] %vm378, %v1573
      %1590 = vst.msk [vmem:[#allocation2 + $0x8] sm:$0xff] %vm378, %v1574
      %1591 = vst.msk [vmem:[#allocation2 + $0x10] sm:$0xff] %vm378, %v1575
      %1592 = vst.msk [vmem:[#allocation2 + $0x18] sm:$0xff] %vm378, %v1576
      %1593 = vst.msk [vmem:[#allocation2 + $0x20] sm:$0xff] %vm378, %v1577
      %1594 = vst.msk [vmem:[#allocation2 + $0x28] sm:$0xff] %vm378, %v1578
      %1595 = vst.msk [vmem:[#allocation2 + $0x30] sm:$0xff] %vm378, %v1579
      %1596 = vst.msk [vmem:[#allocation2 + $0x38] sm:$0xff] %vm378, %v1580
      %1597 = vst.msk [vmem:[#allocation2 + $0x40] sm:$0xff] %vm378, %v1581
      %1598 = vst.msk [vmem:[#allocation2 + $0x48] sm:$0xff] %vm378, %v1582
      %1599 = vst.msk [vmem:[#allocation2 + $0x50] sm:$0xff] %vm378, %v1583
      %1600 = vst.msk [vmem:[#allocation2 + $0x58] sm:$0xff] %vm378, %v1584
      %1601 = vst.msk [vmem:[#allocation2 + $0x60] sm:$0xff] %vm378, %v1585
      %1602 = vst.msk [vmem:[#allocation2 + $0x68] sm:$0xff] %vm378, %v1586
      %1603 = vst.msk [vmem:[#allocation2 + $0x70] sm:$0xff] %vm378, %v1587
      %1604 = vst.msk [vmem:[#allocation2 + $0x78] sm:$0xff] %vm378, %v1588
      %v1605 = vld [vmem:[#allocation2] sm:$0xff]
      %v1606 = vld [vmem:[#allocation2 + $0x8] sm:$0xff]
      %v1607 = vld [vmem:[#allocation2 + $0x10] sm:$0xff]
      %v1608 = vld [vmem:[#allocation2 + $0x18] sm:$0xff]
      %v1609 = vld [vmem:[#allocation2 + $0x20] sm:$0xff]
      %v1610 = vld [vmem:[#allocation2 + $0x28] sm:$0xff]
      %v1611 = vld [vmem:[#allocation2 + $0x30] sm:$0xff]
      %v1612 = vld [vmem:[#allocation2 + $0x38] sm:$0xff]
      %v1613 = vld [vmem:[#allocation2 + $0x40] sm:$0xff]
      %v1614 = vld [vmem:[#allocation2 + $0x48] sm:$0xff]
      %v1615 = vld [vmem:[#allocation2 + $0x50] sm:$0xff]
      %v1616 = vld [vmem:[#allocation2 + $0x58] sm:$0xff]
      %v1617 = vld [vmem:[#allocation2 + $0x60] sm:$0xff]
      %v1618 = vld [vmem:[#allocation2 + $0x68] sm:$0xff]
      %v1619 = vld [vmem:[#allocation2 + $0x70] sm:$0xff]
      %v1620 = vld [vmem:[#allocation2 + $0x78] sm:$0xff]
      %s1621 = scalar_lea.vmem %s2, 20
      %v1622 = vld [vmem:[%s1621] sm:$0xf]
      %v1624 = vrot.slane %v372, 5
      %v1625 = vrot.slane %v1624, 4
      %v1626 = vrot.slane %v373, 5
      %v1627 = vsel %vm1030, %v1625, %v1626
      %v1628 = vrot.slane %v1626, 4
      %v1629 = vrot.slane %v374, 5
      %v1630 = vsel %vm1030, %v1628, %v1629
      %v1631 = vunpack.c.l.b16 %v1627
      %v1632 = vunpack.c.l.b16 %v1630
      %v1633 = vpack.c.b16 %v1632, %v1631
      %v1635 = vsel %vm378, %v1633, 0
      %v1638 = vsel %vm476, %v1622, 0
      %1640 = vmatprep.subr.bf16.mxu0 0
      %1641 = vmatpush1.bf16.msra.mxu0 %v1638
      %1642 = vmatprep.subr.bf16.mxu0 0
      %1643 = vmatpush1.bf16.msra.mxu0 0
      %1644 = vmatprep.subr.bf16.mxu0 0
      %1645 = vmatpush1.bf16.msra.mxu0 0
      %1646 = vmatprep.subr.bf16.mxu0 0
      %1647 = vmatpush1.bf16.msra.mxu0 0
      %1648 = vmatprep.subr.bf16.mxu0 0
      %1649 = vmatpush1.bf16.msra.mxu0 0
      %1650 = vmatprep.subr.bf16.mxu0 0
      %1651 = vmatpush1.bf16.msra.mxu0 0
      %1652 = vmatprep.subr.bf16.mxu0 0
      %1653 = vmatpush1.bf16.msra.mxu0 0
      %1654 = vmatprep.subr.bf16.mxu0 0
      %1655 = vmatpush1.bf16.msra.mxu0 0
      %1656 = vmatprep.subr.bf16.mxu0 0
      %1657 = vmatpush1.bf16.msra.mxu0 0
      %1658 = vmatprep.subr.bf16.mxu0 0
      %1659 = vmatpush1.bf16.msra.mxu0 0
      %1660 = vmatprep.subr.bf16.mxu0 0
      %1661 = vmatpush1.bf16.msra.mxu0 0
      %1662 = vmatprep.subr.bf16.mxu0 0
      %1663 = vmatpush1.bf16.msra.mxu0 0
      %1664 = vmatprep.subr.bf16.mxu0 0
      %1665 = vmatpush1.bf16.msra.mxu0 0
      %1666 = vmatprep.subr.bf16.mxu0 0
      %1667 = vmatpush1.bf16.msra.mxu0 0
      %1668 = vmatprep.subr.bf16.mxu0 0
      %1669 = vmatpush1.bf16.msra.mxu0 0
      %1670 = vmatprep.subr.bf16.mxu0 0
      %1671 = vmatpush1.bf16.msra.mxu0 0
      %1672 = vmatprep.mubr.bf16.mxu0 0
      %1673 = vmatmul.mubr.bf16.gmra.mrb[0].mxu0 %v1115
      %v1674 = vpop.f32.mrb[0].mxu0
      %v1675 = vadd.f32 0.0, %v1674
      %v1676 = vpop.f32.mrb[0].mxu0
      %v1677 = vpop.f32.mrb[0].mxu0
      %v1678 = vadd.f32 0.0, %v1677
      %v1679 = vpop.f32.mrb[0].mxu0
      %1680 = vmatprep.mubr.bf16.mxu0 0
      %1681 = vmatmul.mubr.bf16.gmra.mrb[0].mxu0 %v1118
      %v1682 = vpop.f32.mrb[0].mxu0
      %v1683 = vadd.f32 0.0, %v1682
      %v1684 = vpop.f32.mrb[0].mxu0
      %v1685 = vpop.f32.mrb[0].mxu0
      %v1686 = vadd.f32 0.0, %v1685
      %v1687 = vpop.f32.mrb[0].mxu0
      %1688 = vmatprep.mubr.bf16.mxu0 0
      %1689 = vmatmul.mubr.bf16.gmra.mrb[0].mxu0 %v1121
      %v1690 = vpop.f32.mrb[0].mxu0
      %v1691 = vadd.f32 0.0, %v1690
      %v1692 = vpop.f32.mrb[0].mxu0
      %v1693 = vpop.f32.mrb[0].mxu0
      %v1694 = vadd.f32 0.0, %v1693
      %v1695 = vpop.f32.mrb[0].mxu0
      %1696 = vmatprep.mubr.bf16.mxu0 0
      %1697 = vmatmul.mubr.bf16.gmra.mrb[0].mxu0 %v1124
      %v1698 = vpop.f32.mrb[0].mxu0
      %v1699 = vadd.f32 0.0, %v1698
      %v1700 = vpop.f32.mrb[0].mxu0
      %v1701 = vpop.f32.mrb[0].mxu0
      %v1702 = vadd.f32 0.0, %v1701
      %v1703 = vpop.f32.mrb[0].mxu0
      %1704 = vmatprep.mubr.bf16.mxu0 0
      %1705 = vmatmul.mubr.bf16.gmra.mrb[0].mxu0 %v1127
      %v1706 = vpop.f32.mrb[0].mxu0
      %v1707 = vadd.f32 0.0, %v1706
      %v1708 = vpop.f32.mrb[0].mxu0
      %v1709 = vpop.f32.mrb[0].mxu0
      %v1710 = vadd.f32 0.0, %v1709
      %v1711 = vpop.f32.mrb[0].mxu0
      %1712 = vmatprep.mubr.bf16.mxu0 0
      %1713 = vmatmul.mubr.bf16.gmra.mrb[0].mxu0 %v1130
      %v1714 = vpop.f32.mrb[0].mxu0
      %v1715 = vadd.f32 0.0, %v1714
      %v1716 = vpop.f32.mrb[0].mxu0
      %v1717 = vpop.f32.mrb[0].mxu0
      %v1718 = vadd.f32 0.0, %v1717
      %v1719 = vpop.f32.mrb[0].mxu0
      %1720 = vmatprep.mubr.bf16.mxu0 0
      %1721 = vmatmul.mubr.bf16.gmra.mrb[0].mxu0 %v1133
      %v1722 = vpop.f32.mrb[0].mxu0
      %v1723 = vadd.f32 0.0, %v1722
      %v1724 = vpop.f32.mrb[0].mxu0
      %v1725 = vpop.f32.mrb[0].mxu0
      %v1726 = vadd.f32 0.0, %v1725
      %v1727 = vpop.f32.mrb[0].mxu0
      %1728 = vmatprep.mubr.bf16.mxu0 0
      %1729 = vmatmul.mubr.bf16.gmra.mrb[0].mxu0 %v1635
      %v1730 = vpop.f32.mrb[0].mxu0
      %v1731 = vadd.f32 0.0, %v1730
      %v1732 = vpop.f32.mrb[0].mxu0
      %v1733 = vpop.f32.mrb[0].mxu0
      %v1734 = vadd.f32 0.0, %v1733
      %v1735 = vpop.f32.mrb[0].mxu0
      %1736 = vdwg.mxu0
      %v1737 = vadd.f32 %v1605, %v1675
      %v1738 = vadd.f32 %v1606, %v1678
      %v1739 = vadd.f32 %v1607, %v1683
      %v1740 = vadd.f32 %v1608, %v1686
      %v1741 = vadd.f32 %v1609, %v1691
      %v1742 = vadd.f32 %v1610, %v1694
      %v1743 = vadd.f32 %v1611, %v1699
      %v1744 = vadd.f32 %v1612, %v1702
      %v1745 = vadd.f32 %v1613, %v1707
      %v1746 = vadd.f32 %v1614, %v1710
      %v1747 = vadd.f32 %v1615, %v1715
      %v1748 = vadd.f32 %v1616, %v1718
      %v1749 = vadd.f32 %v1617, %v1723
      %v1750 = vadd.f32 %v1618, %v1726
      %v1751 = vadd.f32 %v1619, %v1731
      %v1752 = vadd.f32 %v1620, %v1734
      %1753 = vst.msk [vmem:[#allocation2] sm:$0xff] %vm378, %v1737
      %1754 = vst.msk [vmem:[#allocation2 + $0x8] sm:$0xff] %vm378, %v1738
      %1755 = vst.msk [vmem:[#allocation2 + $0x10] sm:$0xff] %vm378, %v1739
      %1756 = vst.msk [vmem:[#allocation2 + $0x18] sm:$0xff] %vm378, %v1740
      %1757 = vst.msk [vmem:[#allocation2 + $0x20] sm:$0xff] %vm378, %v1741
      %1758 = vst.msk [vmem:[#allocation2 + $0x28] sm:$0xff] %vm378, %v1742
      %1759 = vst.msk [vmem:[#allocation2 + $0x30] sm:$0xff] %vm378, %v1743
      %1760 = vst.msk [vmem:[#allocation2 + $0x38] sm:$0xff] %vm378, %v1744
      %1761 = vst.msk [vmem:[#allocation2 + $0x40] sm:$0xff] %vm378, %v1745
      %1762 = vst.msk [vmem:[#allocation2 + $0x48] sm:$0xff] %vm378, %v1746
      %1763 = vst.msk [vmem:[#allocation2 + $0x50] sm:$0xff] %vm378, %v1747
      %1764 = vst.msk [vmem:[#allocation2 + $0x58] sm:$0xff] %vm378, %v1748
      %1765 = vst.msk [vmem:[#allocation2 + $0x60] sm:$0xff] %vm378, %v1749
      %1766 = vst.msk [vmem:[#allocation2 + $0x68] sm:$0xff] %vm378, %v1750
      %1767 = vst.msk [vmem:[#allocation2 + $0x70] sm:$0xff] %vm378, %v1751
      %1768 = vst.msk [vmem:[#allocation2 + $0x78] sm:$0xff] %vm378, %v1752
      %v1769 = vld [vmem:[#allocation2] sm:$0xff]
      %v1770 = vld [vmem:[#allocation2 + $0x8] sm:$0xff]
      %v1771 = vld [vmem:[#allocation2 + $0x10] sm:$0xff]
      %v1772 = vld [vmem:[#allocation2 + $0x18] sm:$0xff]
      %v1773 = vld [vmem:[#allocation2 + $0x20] sm:$0xff]
      %v1774 = vld [vmem:[#allocation2 + $0x28] sm:$0xff]
      %v1775 = vld [vmem:[#allocation2 + $0x30] sm:$0xff]
      %v1776 = vld [vmem:[#allocation2 + $0x38] sm:$0xff]
      %v1777 = vld [vmem:[#allocation2 + $0x40] sm:$0xff]
      %v1778 = vld [vmem:[#allocation2 + $0x48] sm:$0xff]
      %v1779 = vld [vmem:[#allocation2 + $0x50] sm:$0xff]
      %v1780 = vld [vmem:[#allocation2 + $0x58] sm:$0xff]
      %v1781 = vld [vmem:[#allocation2 + $0x60] sm:$0xff]
      %v1782 = vld [vmem:[#allocation2 + $0x68] sm:$0xff]
      %v1783 = vld [vmem:[#allocation2 + $0x70] sm:$0xff]
      %v1784 = vld [vmem:[#allocation2 + $0x78] sm:$0xff]
      %s1785 = scalar_lea.vmem %s2, 24
      %v1786 = vld [vmem:[%s1785] sm:$0xf]
      %v1789 = vunpack.c.l.b16 %v375
      %v1790 = vunpack.c.l.b16 %v376
      %v1791 = vpack.c.b16 %v1790, %v1789
      %v1793 = vsel %vm378, %v1791, 0
      %v1796 = vsel %vm476, %v1786, 0
      %1798 = vmatprep.subr.bf16.mxu0 0
      %1799 = vmatpush1.bf16.msra.mxu0 %v1796
      %1800 = vmatprep.subr.bf16.mxu0 0
      %1801 = vmatpush1.bf16.msra.mxu0 0
      %1802 = vmatprep.subr.bf16.mxu0 0
      %1803 = vmatpush1.bf16.msra.mxu0 0
      %1804 = vmatprep.subr.bf16.mxu0 0
      %1805 = vmatpush1.bf16.msra.mxu0 0
      %1806 = vmatprep.subr.bf16.mxu0 0
      %1807 = vmatpush1.bf16.msra.mxu0 0
      %1808 = vmatprep.subr.bf16.mxu0 0
      %1809 = vmatpush1.bf16.msra.mxu0 0
      %1810 = vmatprep.subr.bf16.mxu0 0
      %1811 = vmatpush1.bf16.msra.mxu0 0
      %1812 = vmatprep.subr.bf16.mxu0 0
      %1813 = vmatpush1.bf16.msra.mxu0 0
      %1814 = vmatprep.subr.bf16.mxu0 0
      %1815 = vmatpush1.bf16.msra.mxu0 0
      %1816 = vmatprep.subr.bf16.mxu0 0
      %1817 = vmatpush1.bf16.msra.mxu0 0
      %1818 = vmatprep.subr.bf16.mxu0 0
      %1819 = vmatpush1.bf16.msra.mxu0 0
      %1820 = vmatprep.subr.bf16.mxu0 0
      %1821 = vmatpush1.bf16.msra.mxu0 0
      %1822 = vmatprep.subr.bf16.mxu0 0
      %1823 = vmatpush1.bf16.msra.mxu0 0
      %1824 = vmatprep.subr.bf16.mxu0 0
      %1825 = vmatpush1.bf16.msra.mxu0 0
      %1826 = vmatprep.subr.bf16.mxu0 0
      %1827 = vmatpush1.bf16.msra.mxu0 0
      %1828 = vmatprep.subr.bf16.mxu0 0
      %1829 = vmatpush1.bf16.msra.mxu0 0
      %1830 = vmatprep.mubr.bf16.mxu0 0
      %1831 = vmatmul.mubr.bf16.gmra.mrb[0].mxu0 %v459
      %v1832 = vpop.f32.mrb[0].mxu0
      %v1833 = vadd.f32 0.0, %v1832
      %v1834 = vpop.f32.mrb[0].mxu0
      %v1835 = vpop.f32.mrb[0].mxu0
      %v1836 = vadd.f32 0.0, %v1835
      %v1837 = vpop.f32.mrb[0].mxu0
      %1838 = vmatprep.mubr.bf16.mxu0 0
      %1839 = vmatmul.mubr.bf16.gmra.mrb[0].mxu0 %v462
      %v1840 = vpop.f32.mrb[0].mxu0
      %v1841 = vadd.f32 0.0, %v1840
      %v1842 = vpop.f32.mrb[0].mxu0
      %v1843 = vpop.f32.mrb[0].mxu0
      %v1844 = vadd.f32 0.0, %v1843
      %v1845 = vpop.f32.mrb[0].mxu0
      %1846 = vmatprep.mubr.bf16.mxu0 0
      %1847 = vmatmul.mubr.bf16.gmra.mrb[0].mxu0 %v465
      %v1848 = vpop.f32.mrb[0].mxu0
      %v1849 = vadd.f32 0.0, %v1848
      %v1850 = vpop.f32.mrb[0].mxu0
      %v1851 = vpop.f32.mrb[0].mxu0
      %v1852 = vadd.f32 0.0, %v1851
      %v1853 = vpop.f32.mrb[0].mxu0
      %1854 = vmatprep.mubr.bf16.mxu0 0
      %1855 = vmatmul.mubr.bf16.gmra.mrb[0].mxu0 %v468
      %v1856 = vpop.f32.mrb[0].mxu0
      %v1857 = vadd.f32 0.0, %v1856
      %v1858 = vpop.f32.mrb[0].mxu0
      %v1859 = vpop.f32.mrb[0].mxu0
      %v1860 = vadd.f32 0.0, %v1859
      %v1861 = vpop.f32.mrb[0].mxu0
      %1862 = vmatprep.mubr.bf16.mxu0 0
      %1863 = vmatmul.mubr.bf16.gmra.mrb[0].mxu0 %v471
      %v1864 = vpop.f32.mrb[0].mxu0
      %v1865 = vadd.f32 0.0, %v1864
      %v1866 = vpop.f32.mrb[0].mxu0
      %v1867 = vpop.f32.mrb[0].mxu0
      %v1868 = vadd.f32 0.0, %v1867
      %v1869 = vpop.f32.mrb[0].mxu0
      %1870 = vmatprep.mubr.bf16.mxu0 0
      %1871 = vmatmul.mubr.bf16.gmra.mrb[0].mxu0 %v474
      %v1872 = vpop.f32.mrb[0].mxu0
      %v1873 = vadd.f32 0.0, %v1872
      %v1874 = vpop.f32.mrb[0].mxu0
      %v1875 = vpop.f32.mrb[0].mxu0
      %v1876 = vadd.f32 0.0, %v1875
      %v1877 = vpop.f32.mrb[0].mxu0
      %1878 = vmatprep.mubr.bf16.mxu0 0
      %1879 = vmatmul.mubr.bf16.gmra.mrb[0].mxu0 %v1291
      %v1880 = vpop.f32.mrb[0].mxu0
      %v1881 = vadd.f32 0.0, %v1880
      %v1882 = vpop.f32.mrb[0].mxu0
      %v1883 = vpop.f32.mrb[0].mxu0
      %v1884 = vadd.f32 0.0, %v1883
      %v1885 = vpop.f32.mrb[0].mxu0
      %1886 = vmatprep.mubr.bf16.mxu0 0
      %1887 = vmatmul.mubr.bf16.gmra.mrb[0].mxu0 %v1793
      %v1888 = vpop.f32.mrb[0].mxu0
      %v1889 = vadd.f32 0.0, %v1888
      %v1890 = vpop.f32.mrb[0].mxu0
      %v1891 = vpop.f32.mrb[0].mxu0
      %v1892 = vadd.f32 0.0, %v1891
      %v1893 = vpop.f32.mrb[0].mxu0
      %1894 = vdwg.mxu0
      %v1895 = vadd.f32 %v1769, %v1833
      %v1896 = vadd.f32 %v1770, %v1836
      %v1897 = vadd.f32 %v1771, %v1841
      %v1898 = vadd.f32 %v1772, %v1844
      %v1899 = vadd.f32 %v1773, %v1849
      %v1900 = vadd.f32 %v1774, %v1852
      %v1901 = vadd.f32 %v1775, %v1857
      %v1902 = vadd.f32 %v1776, %v1860
      %v1903 = vadd.f32 %v1777, %v1865
      %v1904 = vadd.f32 %v1778, %v1868
      %v1905 = vadd.f32 %v1779, %v1873
      %v1906 = vadd.f32 %v1780, %v1876
      %v1907 = vadd.f32 %v1781, %v1881
      %v1908 = vadd.f32 %v1782, %v1884
      %v1909 = vadd.f32 %v1783, %v1889
      %v1910 = vadd.f32 %v1784, %v1892
      %1911 = vst.msk [vmem:[#allocation2] sm:$0xff] %vm378, %v1895
      %1912 = vst.msk [vmem:[#allocation2 + $0x8] sm:$0xff] %vm378, %v1896
      %1913 = vst.msk [vmem:[#allocation2 + $0x10] sm:$0xff] %vm378, %v1897
      %1914 = vst.msk [vmem:[#allocation2 + $0x18] sm:$0xff] %vm378, %v1898
      %1915 = vst.msk [vmem:[#allocation2 + $0x20] sm:$0xff] %vm378, %v1899
      %1916 = vst.msk [vmem:[#allocation2 + $0x28] sm:$0xff] %vm378, %v1900
      %1917 = vst.msk [vmem:[#allocation2 + $0x30] sm:$0xff] %vm378, %v1901
      %1918 = vst.msk [vmem:[#allocation2 + $0x38] sm:$0xff] %vm378, %v1902
      %1919 = vst.msk [vmem:[#allocation2 + $0x40] sm:$0xff] %vm378, %v1903
      %1920 = vst.msk [vmem:[#allocation2 + $0x48] sm:$0xff] %vm378, %v1904
      %1921 = vst.msk [vmem:[#allocation2 + $0x50] sm:$0xff] %vm378, %v1905
      %1922 = vst.msk [vmem:[#allocation2 + $0x58] sm:$0xff] %vm378, %v1906
      %1923 = vst.msk [vmem:[#allocation2 + $0x60] sm:$0xff] %vm378, %v1907
      %1924 = vst.msk [vmem:[#allocation2 + $0x68] sm:$0xff] %vm378, %v1908
      %1925 = vst.msk [vmem:[#allocation2 + $0x70] sm:$0xff] %vm378, %v1909
      %1926 = vst.msk [vmem:[#allocation2 + $0x78] sm:$0xff] %vm378, %v1910
      %v1927 = vld [vmem:[#allocation2] sm:$0xff]
      %v1928 = vld [vmem:[#allocation2 + $0x8] sm:$0xff]
      %v1929 = vld [vmem:[#allocation2 + $0x10] sm:$0xff]
      %v1930 = vld [vmem:[#allocation2 + $0x18] sm:$0xff]
      %v1931 = vld [vmem:[#allocation2 + $0x20] sm:$0xff]
      %v1932 = vld [vmem:[#allocation2 + $0x28] sm:$0xff]
      %v1933 = vld [vmem:[#allocation2 + $0x30] sm:$0xff]
      %v1934 = vld [vmem:[#allocation2 + $0x38] sm:$0xff]
      %v1935 = vld [vmem:[#allocation2 + $0x40] sm:$0xff]
      %v1936 = vld [vmem:[#allocation2 + $0x48] sm:$0xff]
      %v1937 = vld [vmem:[#allocation2 + $0x50] sm:$0xff]
      %v1938 = vld [vmem:[#allocation2 + $0x58] sm:$0xff]
      %v1939 = vld [vmem:[#allocation2 + $0x60] sm:$0xff]
      %v1940 = vld [vmem:[#allocation2 + $0x68] sm:$0xff]
      %v1941 = vld [vmem:[#allocation2 + $0x70] sm:$0xff]
      %v1942 = vld [vmem:[#allocation2 + $0x78] sm:$0xff]
      %s1943 = scalar_lea.vmem %s2, 28
      %v1944 = vld [vmem:[%s1943] sm:$0xf]
      %v1946 = vshrl.u32 %v375, 16
      %v1948 = vrot.slane %v1946, 4
      %v1949 = vshll.u32 %v375, 16
      %v1951 = vrot.slane %v1949, 5
      %v1952 = vor.u32 %v1948, %v1951
      %v1953 = vrot.slane %v1952, 4
      %v1955 = vshll.u32 %v376, 16
      %v1957 = vrot.slane %v1955, 5
      %v1958 = vsel %vm629, %v1953, %v1957
      %v1959 = vshrl.u32 %v376, 16
      %v1961 = vrot.slane %v1959, 4
      %v1962 = vor.u32 %v1961, %v1957
      %v1963 = vrot.slane %v1962, 4
      %v1965 = vshll.u32 %v377, 16
      %v1967 = vrot.slane %v1965, 5
      %v1968 = vsel %vm629, %v1963, %v1967
      %v1969 = vunpack.c.l.b16 %v1958
      %v1970 = vunpack.c.l.b16 %v1968
      %v1971 = vpack.c.b16 %v1970, %v1969
      %v1973 = vsel %vm378, %v1971, 0
      %v1976 = vsel %vm476, %v1944, 0
      %1978 = vmatprep.subr.bf16.mxu0 0
      %1979 = vmatpush1.bf16.msra.mxu0 %v1976
      %1980 = vmatprep.subr.bf16.mxu0 0
      %1981 = vmatpush1.bf16.msra.mxu0 0
      %1982 = vmatprep.subr.bf16.mxu0 0
      %1983 = vmatpush1.bf16.msra.mxu0 0
      %1984 = vmatprep.subr.bf16.mxu0 0
      %1985 = vmatpush1.bf16.msra.mxu0 0
      %1986 = vmatprep.subr.bf16.mxu0 0
      %1987 = vmatpush1.bf16.msra.mxu0 0
      %1988 = vmatprep.subr.bf16.mxu0 0
      %1989 = vmatpush1.bf16.msra.mxu0 0
      %1990 = vmatprep.subr.bf16.mxu0 0
      %1991 = vmatpush1.bf16.msra.mxu0 0
      %1992 = vmatprep.subr.bf16.mxu0 0
      %1993 = vmatpush1.bf16.msra.mxu0 0
      %1994 = vmatprep.subr.bf16.mxu0 0
      %1995 = vmatpush1.bf16.msra.mxu0 0
      %1996 = vmatprep.subr.bf16.mxu0 0
      %1997 = vmatpush1.bf16.msra.mxu0 0
      %1998 = vmatprep.subr.bf16.mxu0 0
      %1999 = vmatpush1.bf16.msra.mxu0 0
      %2000 = vmatprep.subr.bf16.mxu0 0
      %2001 = vmatpush1.bf16.msra.mxu0 0
      %2002 = vmatprep.subr.bf16.mxu0 0
      %2003 = vmatpush1.bf16.msra.mxu0 0
      %2004 = vmatprep.subr.bf16.mxu0 0
      %2005 = vmatpush1.bf16.msra.mxu0 0
      %2006 = vmatprep.subr.bf16.mxu0 0
      %2007 = vmatpush1.bf16.msra.mxu0 0
      %2008 = vmatprep.subr.bf16.mxu0 0
      %2009 = vmatpush1.bf16.msra.mxu0 0
      %2010 = vmatprep.mubr.bf16.mxu0 0
      %2011 = vmatmul.mubr.bf16.gmra.mrb[0].mxu0 %v853
      %v2012 = vpop.f32.mrb[0].mxu0
      %v2013 = vadd.f32 0.0, %v2012
      %v2014 = vpop.f32.mrb[0].mxu0
      %v2015 = vpop.f32.mrb[0].mxu0
      %v2016 = vadd.f32 0.0, %v2015
      %v2017 = vpop.f32.mrb[0].mxu0
      %2018 = vmatprep.mubr.bf16.mxu0 0
      %2019 = vmatmul.mubr.bf16.gmra.mrb[0].mxu0 %v856
      %v2020 = vpop.f32.mrb[0].mxu0
      %v2021 = vadd.f32 0.0, %v2020
      %v2022 = vpop.f32.mrb[0].mxu0
      %v2023 = vpop.f32.mrb[0].mxu0
      %v2024 = vadd.f32 0.0, %v2023
      %v2025 = vpop.f32.mrb[0].mxu0
      %2026 = vmatprep.mubr.bf16.mxu0 0
      %2027 = vmatmul.mubr.bf16.gmra.mrb[0].mxu0 %v859
      %v2028 = vpop.f32.mrb[0].mxu0
      %v2029 = vadd.f32 0.0, %v2028
      %v2030 = vpop.f32.mrb[0].mxu0
      %v2031 = vpop.f32.mrb[0].mxu0
      %v2032 = vadd.f32 0.0, %v2031
      %v2033 = vpop.f32.mrb[0].mxu0
      %2034 = vmatprep.mubr.bf16.mxu0 0
      %2035 = vmatmul.mubr.bf16.gmra.mrb[0].mxu0 %v862
      %v2036 = vpop.f32.mrb[0].mxu0
      %v2037 = vadd.f32 0.0, %v2036
      %v2038 = vpop.f32.mrb[0].mxu0
      %v2039 = vpop.f32.mrb[0].mxu0
      %v2040 = vadd.f32 0.0, %v2039
      %v2041 = vpop.f32.mrb[0].mxu0
      %2042 = vmatprep.mubr.bf16.mxu0 0
      %2043 = vmatmul.mubr.bf16.gmra.mrb[0].mxu0 %v865
      %v2044 = vpop.f32.mrb[0].mxu0
      %v2045 = vadd.f32 0.0, %v2044
      %v2046 = vpop.f32.mrb[0].mxu0
      %v2047 = vpop.f32.mrb[0].mxu0
      %v2048 = vadd.f32 0.0, %v2047
      %v2049 = vpop.f32.mrb[0].mxu0
      %2050 = vmatprep.mubr.bf16.mxu0 0
      %2051 = vmatmul.mubr.bf16.gmra.mrb[0].mxu0 %v868
      %v2052 = vpop.f32.mrb[0].mxu0
      %v2053 = vadd.f32 0.0, %v2052
      %v2054 = vpop.f32.mrb[0].mxu0
      %v2055 = vpop.f32.mrb[0].mxu0
      %v2056 = vadd.f32 0.0, %v2055
      %v2057 = vpop.f32.mrb[0].mxu0
      %2058 = vmatprep.mubr.bf16.mxu0 0
      %2059 = vmatmul.mubr.bf16.gmra.mrb[0].mxu0 %v1471
      %v2060 = vpop.f32.mrb[0].mxu0
      %v2061 = vadd.f32 0.0, %v2060
      %v2062 = vpop.f32.mrb[0].mxu0
      %v2063 = vpop.f32.mrb[0].mxu0
      %v2064 = vadd.f32 0.0, %v2063
      %v2065 = vpop.f32.mrb[0].mxu0
      %2066 = vmatprep.mubr.bf16.mxu0 0
      %2067 = vmatmul.mubr.bf16.gmra.mrb[0].mxu0 %v1973
      %v2068 = vpop.f32.mrb[0].mxu0
      %v2069 = vadd.f32 0.0, %v2068
      %v2070 = vpop.f32.mrb[0].mxu0
      %v2071 = vpop.f32.mrb[0].mxu0
      %v2072 = vadd.f32 0.0, %v2071
      %v2073 = vpop.f32.mrb[0].mxu0
      %2074 = vdwg.mxu0
      %v2075 = vadd.f32 %v1927, %v2013
      %v2076 = vadd.f32 %v1928, %v2016
      %v2077 = vadd.f32 %v1929, %v2021
      %v2078 = vadd.f32 %v1930, %v2024
      %v2079 = vadd.f32 %v1931, %v2029
      %v2080 = vadd.f32 %v1932, %v2032
      %v2081 = vadd.f32 %v1933, %v2037
      %v2082 = vadd.f32 %v1934, %v2040
      %v2083 = vadd.f32 %v1935, %v2045
      %v2084 = vadd.f32 %v1936, %v2048
      %v2085 = vadd.f32 %v1937, %v2053
      %v2086 = vadd.f32 %v1938, %v2056
      %v2087 = vadd.f32 %v1939, %v2061
      %v2088 = vadd.f32 %v1940, %v2064
      %v2089 = vadd.f32 %v1941, %v2069
      %v2090 = vadd.f32 %v1942, %v2072
      %2091 = vst.msk [vmem:[#allocation2] sm:$0xff] %vm378, %v2075
      %2092 = vst.msk [vmem:[#allocation2 + $0x8] sm:$0xff] %vm378, %v2076
      %2093 = vst.msk [vmem:[#allocation2 + $0x10] sm:$0xff] %vm378, %v2077
      %2094 = vst.msk [vmem:[#allocation2 + $0x18] sm:$0xff] %vm378, %v2078
      %2095 = vst.msk [vmem:[#allocation2 + $0x20] sm:$0xff] %vm378, %v2079
      %2096 = vst.msk [vmem:[#allocation2 + $0x28] sm:$0xff] %vm378, %v2080
      %2097 = vst.msk [vmem:[#allocation2 + $0x30] sm:$0xff] %vm378, %v2081
      %2098 = vst.msk [vmem:[#allocation2 + $0x38] sm:$0xff] %vm378, %v2082
      %2099 = vst.msk [vmem:[#allocation2 + $0x40] sm:$0xff] %vm378, %v2083
      %2100 = vst.msk [vmem:[#allocation2 + $0x48] sm:$0xff] %vm378, %v2084
      %2101 = vst.msk [vmem:[#allocation2 + $0x50] sm:$0xff] %vm378, %v2085
      %2102 = vst.msk [vmem:[#allocation2 + $0x58] sm:$0xff] %vm378, %v2086
      %2103 = vst.msk [vmem:[#allocation2 + $0x60] sm:$0xff] %vm378, %v2087
      %2104 = vst.msk [vmem:[#allocation2 + $0x68] sm:$0xff] %vm378, %v2088
      %2105 = vst.msk [vmem:[#allocation2 + $0x70] sm:$0xff] %vm378, %v2089
      %2106 = vst.msk [vmem:[#allocation2 + $0x78] sm:$0xff] %vm378, %v2090
      %v2107 = vld [vmem:[#allocation2] sm:$0xff]
      %v2108 = vld [vmem:[#allocation2 + $0x8] sm:$0xff]
      %v2109 = vld [vmem:[#allocation2 + $0x10] sm:$0xff]
      %v2110 = vld [vmem:[#allocation2 + $0x18] sm:$0xff]
      %v2111 = vld [vmem:[#allocation2 + $0x20] sm:$0xff]
      %v2112 = vld [vmem:[#allocation2 + $0x28] sm:$0xff]
      %v2113 = vld [vmem:[#allocation2 + $0x30] sm:$0xff]
      %v2114 = vld [vmem:[#allocation2 + $0x38] sm:$0xff]
      %v2115 = vld [vmem:[#allocation2 + $0x40] sm:$0xff]
      %v2116 = vld [vmem:[#allocation2 + $0x48] sm:$0xff]
      %v2117 = vld [vmem:[#allocation2 + $0x50] sm:$0xff]
      %v2118 = vld [vmem:[#allocation2 + $0x58] sm:$0xff]
      %v2119 = vld [vmem:[#allocation2 + $0x60] sm:$0xff]
      %v2120 = vld [vmem:[#allocation2 + $0x68] sm:$0xff]
      %v2121 = vld [vmem:[#allocation2 + $0x70] sm:$0xff]
      %v2122 = vld [vmem:[#allocation2 + $0x78] sm:$0xff]
      %s2123 = scalar_lea.vmem %s2, 32
      %v2124 = vld [vmem:[%s2123] sm:$0xf]
      %v2126 = vrot.slane %v375, 5
      %v2127 = vrot.slane %v2126, 4
      %v2128 = vrot.slane %v376, 5
      %v2129 = vsel %vm1030, %v2127, %v2128
      %v2130 = vrot.slane %v2128, 4
      %v2131 = vrot.slane %v377, 5
      %v2132 = vsel %vm1030, %v2130, %v2131
      %v2133 = vunpack.c.l.b16 %v2129
      %v2134 = vunpack.c.l.b16 %v2132
      %v2135 = vpack.c.b16 %v2134, %v2133
      %v2137 = vsel %vm378, %v2135, 0
      %v2140 = vsel %vm476, %v2124, 0
      %2142 = vmatprep.subr.bf16.mxu0 0
      %2143 = vmatpush1.bf16.msra.mxu0 %v2140
      %2144 = vmatprep.subr.bf16.mxu0 0
      %2145 = vmatpush1.bf16.msra.mxu0 0
      %2146 = vmatprep.subr.bf16.mxu0 0
      %2147 = vmatpush1.bf16.msra.mxu0 0
      %2148 = vmatprep.subr.bf16.mxu0 0
      %2149 = vmatpush1.bf16.msra.mxu0 0
      %2150 = vmatprep.subr.bf16.mxu0 0
      %2151 = vmatpush1.bf16.msra.mxu0 0
      %2152 = vmatprep.subr.bf16.mxu0 0
      %2153 = vmatpush1.bf16.msra.mxu0 0
      %2154 = vmatprep.subr.bf16.mxu0 0
      %2155 = vmatpush1.bf16.msra.mxu0 0
      %2156 = vmatprep.subr.bf16.mxu0 0
      %2157 = vmatpush1.bf16.msra.mxu0 0
      %2158 = vmatprep.subr.bf16.mxu0 0
      %2159 = vmatpush1.bf16.msra.mxu0 0
      %2160 = vmatprep.subr.bf16.mxu0 0
      %2161 = vmatpush1.bf16.msra.mxu0 0
      %2162 = vmatprep.subr.bf16.mxu0 0
      %2163 = vmatpush1.bf16.msra.mxu0 0
      %2164 = vmatprep.subr.bf16.mxu0 0
      %2165 = vmatpush1.bf16.msra.mxu0 0
      %2166 = vmatprep.subr.bf16.mxu0 0
      %2167 = vmatpush1.bf16.msra.mxu0 0
      %2168 = vmatprep.subr.bf16.mxu0 0
      %2169 = vmatpush1.bf16.msra.mxu0 0
      %2170 = vmatprep.subr.bf16.mxu0 0
      %2171 = vmatpush1.bf16.msra.mxu0 0
      %2172 = vmatprep.subr.bf16.mxu0 0
      %2173 = vmatpush1.bf16.msra.mxu0 0
      %2174 = vmatprep.mubr.bf16.mxu0 0
      %2175 = vmatmul.mubr.bf16.gmra.mrb[0].mxu0 %v1118
      %v2176 = vpop.f32.mrb[0].mxu0
      %v2177 = vadd.f32 0.0, %v2176
      %v2178 = vpop.f32.mrb[0].mxu0
      %v2179 = vpop.f32.mrb[0].mxu0
      %v2180 = vadd.f32 0.0, %v2179
      %v2181 = vpop.f32.mrb[0].mxu0
      %2182 = vmatprep.mubr.bf16.mxu0 0
      %2183 = vmatmul.mubr.bf16.gmra.mrb[0].mxu0 %v1121
      %v2184 = vpop.f32.mrb[0].mxu0
      %v2185 = vadd.f32 0.0, %v2184
      %v2186 = vpop.f32.mrb[0].mxu0
      %v2187 = vpop.f32.mrb[0].mxu0
      %v2188 = vadd.f32 0.0, %v2187
      %v2189 = vpop.f32.mrb[0].mxu0
      %2190 = vmatprep.mubr.bf16.mxu0 0
      %2191 = vmatmul.mubr.bf16.gmra.mrb[0].mxu0 %v1124
      %v2192 = vpop.f32.mrb[0].mxu0
      %v2193 = vadd.f32 0.0, %v2192
      %v2194 = vpop.f32.mrb[0].mxu0
      %v2195 = vpop.f32.mrb[0].mxu0
      %v2196 = vadd.f32 0.0, %v2195
      %v2197 = vpop.f32.mrb[0].mxu0
      %2198 = vmatprep.mubr.bf16.mxu0 0
      %2199 = vmatmul.mubr.bf16.gmra.mrb[0].mxu0 %v1127
      %v2200 = vpop.f32.mrb[0].mxu0
      %v2201 = vadd.f32 0.0, %v2200
      %v2202 = vpop.f32.mrb[0].mxu0
      %v2203 = vpop.f32.mrb[0].mxu0
      %v2204 = vadd.f32 0.0, %v2203
      %v2205 = vpop.f32.mrb[0].mxu0
      %2206 = vmatprep.mubr.bf16.mxu0 0
      %2207 = vmatmul.mubr.bf16.gmra.mrb[0].mxu0 %v1130
      %v2208 = vpop.f32.mrb[0].mxu0
      %v2209 = vadd.f32 0.0, %v2208
      %v2210 = vpop.f32.mrb[0].mxu0
      %v2211 = vpop.f32.mrb[0].mxu0
      %v2212 = vadd.f32 0.0, %v2211
      %v2213 = vpop.f32.mrb[0].mxu0
      %2214 = vmatprep.mubr.bf16.mxu0 0
      %2215 = vmatmul.mubr.bf16.gmra.mrb[0].mxu0 %v1133
      %v2216 = vpop.f32.mrb[0].mxu0
      %v2217 = vadd.f32 0.0, %v2216
      %v2218 = vpop.f32.mrb[0].mxu0
      %v2219 = vpop.f32.mrb[0].mxu0
      %v2220 = vadd.f32 0.0, %v2219
      %v2221 = vpop.f32.mrb[0].mxu0
      %2222 = vmatprep.mubr.bf16.mxu0 0
      %2223 = vmatmul.mubr.bf16.gmra.mrb[0].mxu0 %v1635
      %v2224 = vpop.f32.mrb[0].mxu0
      %v2225 = vadd.f32 0.0, %v2224
      %v2226 = vpop.f32.mrb[0].mxu0
      %v2227 = vpop.f32.mrb[0].mxu0
      %v2228 = vadd.f32 0.0, %v2227
      %v2229 = vpop.f32.mrb[0].mxu0
      %2230 = vmatprep.mubr.bf16.mxu0 0
      %2231 = vmatmul.mubr.bf16.gmra.mrb[0].mxu0 %v2137
      %v2232 = vpop.f32.mrb[0].mxu0
      %v2233 = vadd.f32 0.0, %v2232
      %v2234 = vpop.f32.mrb[0].mxu0
      %v2235 = vpop.f32.mrb[0].mxu0
      %v2236 = vadd.f32 0.0, %v2235
      %v2237 = vpop.f32.mrb[0].mxu0
      %2238 = vdwg.mxu0
      %v2239 = vadd.f32 %v2107, %v2177
      %v2240 = vadd.f32 %v2108, %v2180
      %v2241 = vadd.f32 %v2109, %v2185
      %v2242 = vadd.f32 %v2110, %v2188
      %v2243 = vadd.f32 %v2111, %v2193
      %v2244 = vadd.f32 %v2112, %v2196
      %v2245 = vadd.f32 %v2113, %v2201
      %v2246 = vadd.f32 %v2114, %v2204
      %v2247 = vadd.f32 %v2115, %v2209
      %v2248 = vadd.f32 %v2116, %v2212
      %v2249 = vadd.f32 %v2117, %v2217
      %v2250 = vadd.f32 %v2118, %v2220
      %v2251 = vadd.f32 %v2119, %v2225
      %v2252 = vadd.f32 %v2120, %v2228
      %v2253 = vadd.f32 %v2121, %v2233
      %v2254 = vadd.f32 %v2122, %v2236
      %2255 = vst.msk [vmem:[#allocation2] sm:$0xff] %vm378, %v2239
      %2256 = vst.msk [vmem:[#allocation2 + $0x8] sm:$0xff] %vm378, %v2240
      %2257 = vst.msk [vmem:[#allocation2 + $0x10] sm:$0xff] %vm378, %v2241
      %2258 = vst.msk [vmem:[#allocation2 + $0x18] sm:$0xff] %vm378, %v2242
      %2259 = vst.msk [vmem:[#allocation2 + $0x20] sm:$0xff] %vm378, %v2243
      %2260 = vst.msk [vmem:[#allocation2 + $0x28] sm:$0xff] %vm378, %v2244
      %2261 = vst.msk [vmem:[#allocation2 + $0x30] sm:$0xff] %vm378, %v2245
      %2262 = vst.msk [vmem:[#allocation2 + $0x38] sm:$0xff] %vm378, %v2246
      %2263 = vst.msk [vmem:[#allocation2 + $0x40] sm:$0xff] %vm378, %v2247
      %2264 = vst.msk [vmem:[#allocation2 + $0x48] sm:$0xff] %vm378, %v2248
      %2265 = vst.msk [vmem:[#allocation2 + $0x50] sm:$0xff] %vm378, %v2249
      %2266 = vst.msk [vmem:[#allocation2 + $0x58] sm:$0xff] %vm378, %v2250
      %2267 = vst.msk [vmem:[#allocation2 + $0x60] sm:$0xff] %vm378, %v2251
      %2268 = vst.msk [vmem:[#allocation2 + $0x68] sm:$0xff] %vm378, %v2252
      %2269 = vst.msk [vmem:[#allocation2 + $0x70] sm:$0xff] %vm378, %v2253
      %2270 = vst.msk [vmem:[#allocation2 + $0x78] sm:$0xff] %vm378, %v2254
      %v2271 = vld [vmem:[#allocation2] sm:$0xff]
      %v2272 = vld [vmem:[#allocation2 + $0x8] sm:$0xff]
      %v2273 = vld [vmem:[#allocation2 + $0x10] sm:$0xff]
      %v2274 = vld [vmem:[#allocation2 + $0x18] sm:$0xff]
      %v2275 = vld [vmem:[#allocation2 + $0x20] sm:$0xff]
      %v2276 = vld [vmem:[#allocation2 + $0x28] sm:$0xff]
      %v2277 = vld [vmem:[#allocation2 + $0x30] sm:$0xff]
      %v2278 = vld [vmem:[#allocation2 + $0x38] sm:$0xff]
      %v2279 = vld [vmem:[#allocation2 + $0x40] sm:$0xff]
      %v2280 = vld [vmem:[#allocation2 + $0x48] sm:$0xff]
      %v2281 = vld [vmem:[#allocation2 + $0x50] sm:$0xff]
      %v2282 = vld [vmem:[#allocation2 + $0x58] sm:$0xff]
      %v2283 = vld [vmem:[#allocation2 + $0x60] sm:$0xff]
      %v2284 = vld [vmem:[#allocation2 + $0x68] sm:$0xff]
      %v2285 = vld [vmem:[#allocation2 + $0x70] sm:$0xff]
      %v2286 = vld [vmem:[#allocation2 + $0x78] sm:$0xff]
      %v2287 = vld [vmem:[%s3] sm:$0x1]
      %v2289 = vlaneseq
      %v2290 = vshrl.u32 %v2289, 7
      %v2291 = vsub.s32 0, %v2290
      %v2292 = vrot.slane %v2287, %v2291
      %v2294 = vmul.f32 %v2271, %v2292
      %v2295 = vmul.f32 %v2272, %v2292
      %v2296 = vmul.f32 %v2273, %v2292
      %v2297 = vmul.f32 %v2274, %v2292
      %v2298 = vmul.f32 %v2275, %v2292
      %v2299 = vmul.f32 %v2276, %v2292
      %v2300 = vmul.f32 %v2277, %v2292
      %v2301 = vmul.f32 %v2278, %v2292
      %v2302 = vmul.f32 %v2279, %v2292
      %v2303 = vmul.f32 %v2280, %v2292
      %v2304 = vmul.f32 %v2281, %v2292
      %v2305 = vmul.f32 %v2282, %v2292
      %v2306 = vmul.f32 %v2283, %v2292
      %v2307 = vmul.f32 %v2284, %v2292
      %v2308 = vmul.f32 %v2285, %v2292
      %v2309 = vmul.f32 %v2286, %v2292
      %v2310 = vld [vmem:[%s4] sm:$0x1]
      %v2312 = vlaneseq
      %v2313 = vshrl.u32 %v2312, 7
      %v2314 = vsub.s32 0, %v2313
      %v2315 = vrot.slane %v2310, %v2314
      %v2317 = vadd.f32 %v2294, %v2315
      %v2318 = vadd.f32 %v2295, %v2315
      %v2319 = vadd.f32 %v2296, %v2315
      %v2320 = vadd.f32 %v2297, %v2315
      %v2321 = vadd.f32 %v2298, %v2315
      %v2322 = vadd.f32 %v2299, %v2315
      %v2323 = vadd.f32 %v2300, %v2315
      %v2324 = vadd.f32 %v2301, %v2315
      %v2325 = vadd.f32 %v2302, %v2315
      %v2326 = vadd.f32 %v2303, %v2315
      %v2327 = vadd.f32 %v2304, %v2315
      %v2328 = vadd.f32 %v2305, %v2315
      %v2329 = vadd.f32 %v2306, %v2315
      %v2330 = vadd.f32 %v2307, %v2315
      %v2331 = vadd.f32 %v2308, %v2315
      %v2332 = vadd.f32 %v2309, %v2315
      %v2333 = vmul.f32 %v2317, 0.1
      %v2334 = vmul.f32 %v2318, 0.1
      %v2335 = vmul.f32 %v2319, 0.1
      %v2336 = vmul.f32 %v2320, 0.1
      %v2337 = vmul.f32 %v2321, 0.1
      %v2338 = vmul.f32 %v2322, 0.1
      %v2339 = vmul.f32 %v2323, 0.1
      %v2340 = vmul.f32 %v2324, 0.1
      %v2341 = vmul.f32 %v2325, 0.1
      %v2342 = vmul.f32 %v2326, 0.1
      %v2343 = vmul.f32 %v2327, 0.1
      %v2344 = vmul.f32 %v2328, 0.1
      %v2345 = vmul.f32 %v2329, 0.1
      %v2346 = vmul.f32 %v2330, 0.1
      %v2347 = vmul.f32 %v2331, 0.1
      %v2348 = vmul.f32 %v2332, 0.1
      %v2349 = vmax.f32 %v2317, %v2333
      %v2350 = vmax.f32 %v2318, %v2334
      %v2351 = vmax.f32 %v2319, %v2335
      %v2352 = vmax.f32 %v2320, %v2336
      %v2353 = vmax.f32 %v2321, %v2337
      %v2354 = vmax.f32 %v2322, %v2338
      %v2355 = vmax.f32 %v2323, %v2339
      %v2356 = vmax.f32 %v2324, %v2340
      %v2357 = vmax.f32 %v2325, %v2341
      %v2358 = vmax.f32 %v2326, %v2342
      %v2359 = vmax.f32 %v2327, %v2343
      %v2360 = vmax.f32 %v2328, %v2344
      %v2361 = vmax.f32 %v2329, %v2345
      %v2362 = vmax.f32 %v2330, %v2346
      %v2363 = vmax.f32 %v2331, %v2347
      %v2364 = vmax.f32 %v2332, %v2348
      %2365 = vst.msk [vmem:[%s345] sm:$0xff] %vm378, %v2349
      %2366 = vst.msk [vmem:[%s345 + $0x8] sm:$0xff] %vm378, %v2350
      %2367 = vst.msk [vmem:[%s345 + $0x10] sm:$0xff] %vm378, %v2351
      %2368 = vst.msk [vmem:[%s345 + $0x18] sm:$0xff] %vm378, %v2352
      %2369 = vst.msk [vmem:[%s345 + $0x20] sm:$0xff] %vm378, %v2353
      %2370 = vst.msk [vmem:[%s345 + $0x28] sm:$0xff] %vm378, %v2354
      %2371 = vst.msk [vmem:[%s345 + $0x30] sm:$0xff] %vm378, %v2355
      %2372 = vst.msk [vmem:[%s345 + $0x38] sm:$0xff] %vm378, %v2356
      %2373 = vst.msk [vmem:[%s345 + $0x40] sm:$0xff] %vm378, %v2357
      %2374 = vst.msk [vmem:[%s345 + $0x48] sm:$0xff] %vm378, %v2358
      %2375 = vst.msk [vmem:[%s345 + $0x50] sm:$0xff] %vm378, %v2359
      %2376 = vst.msk [vmem:[%s345 + $0x58] sm:$0xff] %vm378, %v2360
      %2377 = vst.msk [vmem:[%s345 + $0x60] sm:$0xff] %vm378, %v2361
      %2378 = vst.msk [vmem:[%s345 + $0x68] sm:$0xff] %vm378, %v2362
      %2379 = vst.msk [vmem:[%s345 + $0x70] sm:$0xff] %vm378, %v2363
      %2380 = vst.msk [vmem:[%s345 + $0x78] sm:$0xff] %vm378, %v2364
      %s2381 = smul.u32 8, %s21
      %p2382 = scmp.lt.s32.totalorder %s20, 1
      %s2383 = scalar_select %p2382, %s20, 1
      %p2384 = scmp.lt.s32.totalorder %s2381, 15
      %s2385 = scalar_select %p2384, %s2381, 15
      %s2386 = smul.addr %s2385, 2
      %s2387 = smul.addr %s2383, 32
      %s2388 = sadd.s32 %s2386, %s2387
      %s2389 = smul.addr %s2388, 8
      %s2390 = scalar_lea.vmem %s5, %s2389
      // Predicated region
      $region41: #{tpu_custom_call.1} parent=39 // pred_check
        %p2391 = pneg %p171
      $region42: #{tpu_custom_call.1} parent=39 // pred_check_branch
        %2393 = sbr.rel (%p2391) target = $region44
      $region43: #{tpu_custom_call.1} parent=39 // pred_region
        %s2394 = smul.u32 8, %s21
      $region44: #{tpu_custom_call.1} parent=39 // pred_fallthru
        _
    $region40: #{tpu_custom_call.1} parent=5 // pred_fallthru
      _
    %p2395 = scmp.le.s32.totalorder 2, %s11
    // Predicated region
    $region45: #{tpu_custom_call.1} parent=5 // pred_check
      %p2396 = pneg %p2395
    $region46: #{tpu_custom_call.1} parent=5 // pred_check_branch
      %2398 = sbr.rel (%p2396) target = $region48
    $region47: #{tpu_custom_call.1} parent=5 // pred_region
      %s2399 = ssub.s32 %s11, 2
      // Predicated region
      $region49: #{tpu_custom_call.1} parent=47 // pred_check
        %p2400 = pneg %p177
      $region50: #{tpu_custom_call.1} parent=47 // pred_check_branch
        %2402 = sbr.rel (%p2400) target = $region52
      $region51: #{tpu_custom_call.1} parent=47 // pred_region
        %s2403 = smul.u32 8, %s23
        %p2404 = scmp.lt.s32.totalorder %s22, 1
        %s2405 = scalar_select %p2404, %s22, 1
        %p2406 = scmp.lt.s32.totalorder %s2403, 15
        %s2407 = scalar_select %p2406, %s2403, 15
        %s2408 = smul.addr %s2407, 2
        %s2409 = smul.addr %s2405, 32
        %s2410 = sadd.s32 %s2408, %s2409
        %s2411 = smul.addr %s2410, 8
        %s2412 = scalar_lea.vmem %s5, %s2411
      $region52: #{tpu_custom_call.1} parent=47 // pred_fallthru
        _
    $region48: #{tpu_custom_call.1} parent=5 // pred_fallthru
      _
  $region6: #{tpu_custom_call.1} parent=0 // loop_footer
    %s15 = sadd.s32 1, %s11
  $region7: #{tpu_custom_call.1} parent=0 // loop_footer_branch
    %10 = sbr.rel target = $region3
  $region8: #{tpu_custom_call.1} parent=0 // loop_exit
    _

</llo_original>
